<compile_context>
chip_gen: v6e
topology: v6e:2x2x1
jax: 0.10.0
libtpu: 0.0.40
codegen_flags: <defaults>
</compile_context>

<pallas_src>
import functools

import jax
import jax.numpy as jnp
from jax.experimental import pallas as pl
from jax.experimental.pallas import tpu as pltpu

IN_DIM = 784
HID = 128
OUT_DIM = 10
# Lane padding of the f32 activation tile inside VMEM (784 -> 896 lanes); only
# used for the VMEM budget estimate, no data is padded.
K_LANES = ((IN_DIM + 127) // 128) * 128


def mlp_kernel(x_ref, w1_ref, b1_ref, w2_ref, b2_ref, o_ref):
    # Cast activations to bf16 right before the MXU; the f32 HBM->VMEM DMA of x
    # is the critical path, so this VPU cast is free filler.
    x = x_ref[...].astype(jnp.bfloat16)
    # fc1: (tile_b, 784)bf16 @ (784, 128)bf16 -> f32 accumulator (MXU).
    h = jnp.dot(x, w1_ref[...], preferred_element_type=jnp.float32)
    # Bias + ReLU on the f32 accumulator (keep as-is: free under the DMA path,
    # and v5e has no bf16 VPU).
    h = jnp.maximum(h + b1_ref[...], 0.0)
    # fc2: (tile_b, 128)bf16 @ (128, 10)bf16 -> f32 accumulator.
    out = jnp.dot(h.astype(jnp.bfloat16), w2_ref[...],
                  preferred_element_type=jnp.float32)
    o_ref[...] = (out + b2_ref[...]).astype(o_ref.dtype)


def _round_up(x, m):
    return ((x + m - 1) // m) * m


@functools.partial(jax.jit, static_argnames=("tile_b",))
def mlp_forward(x, w1, b1, w2, b2, *, tile_b=1024):
    """x: (B, 784) f32; w1: (784,128); b1: (1,128); w2: (128,10); b2: (1,10).

    Returns (B, 10) f32 logits matching fc2(relu(fc1(x))).
    """
    B = x.shape[0]

    # Effective batch tile: multiple of 16 (bf16 sublane packing), no larger
    # than the (rounded-up) batch.
    tb = max(16, min(int(tile_b), _round_up(B, 16)))
    tb = _round_up(tb, 16)
    n_tiles = pl.cdiv(B, tb)
    # v7x has 2 TensorCores; with a "parallel" batch axis, >=2 tiles keeps both
    # busy.  Costs one extra grid step (~0.35us) on 1-TC chips -> negligible.
    if n_tiles == 1 and B > 16:
        tb = _round_up(pl.cdiv(B, 2), 16)
        n_tiles = pl.cdiv(B, tb)

    # One-time, tiny weight casts (a few hundred KB; negligible vs. activations).
    w1b = w1.astype(jnp.bfloat16)                      # (784, 128)
    w2b = w2.astype(jnp.bfloat16)                      # (128, 10)
    b1f = b1.reshape(1, HID).astype(jnp.float32)
    b2f = b2.reshape(1, OUT_DIM).astype(jnp.float32)

    # VMEM budget: double-buffered x/out tiles + resident weights + headroom.
    vmem_need = (2 * tb * K_LANES * 4          # x tiles (f32, lane-padded)
                 + 2 * tb * 128 * 4            # out tiles (lane-padded to 128)
                 + tb * 128 * 4                # hidden activation
                 + K_LANES * HID * 2           # w1 (bf16, lane/sublane padded)
                 + HID * 128 * 2               # w2 (bf16, lane padded)
                 + 2 * 128 * 4)                # biases
    vmem_limit = min(int(1.5 * vmem_need) + (4 << 20), 40 << 20)

    return pl.pallas_call(
        mlp_kernel,
        out_shape=jax.ShapeDtypeStruct((B, OUT_DIM), jnp.float32),
        grid=(n_tiles,),
        in_specs=[
            # x: raw f32, batch-tiled; last dim is the full 784 (no pad/cast pass).
            pl.BlockSpec((tb, IN_DIM), lambda i: (i, 0)),
            # Weights / biases: constant block index -> VMEM-resident across steps.
            pl.BlockSpec((IN_DIM, HID), lambda i: (0, 0)),
            pl.BlockSpec((1, HID), lambda i: (0, 0)),
            pl.BlockSpec((HID, OUT_DIM), lambda i: (0, 0)),
            pl.BlockSpec((1, OUT_DIM), lambda i: (0, 0)),
        ],
        # Output written directly at its real (B, 10) shape; OOB rows of a
        # ragged last block are discarded on writeback.
        out_specs=pl.BlockSpec((tb, OUT_DIM), lambda i: (i, 0)),
        compiler_params=pltpu.CompilerParams(
            dimension_semantics=("parallel",),   # shards batch across TCs on v7x
            vmem_limit_bytes=vmem_limit),
    )(x, w1b, b1f, w2b, b2f)


def init_params(key):
    """Deterministic synthetic parameters matching nn.Linear(784,128)/(128,10)."""
    k1, k2, k3, k4 = jax.random.split(key, 4)
    bound1 = 1.0 / jnp.sqrt(784.0)
    bound2 = 1.0 / jnp.sqrt(128.0)
    w1 = jax.random.uniform(k1, (IN_DIM, HID), jnp.float32, -bound1, bound1)
    b1 = jax.random.uniform(k2, (1, HID), jnp.float32, -bound1, bound1)
    w2 = jax.random.uniform(k3, (HID, OUT_DIM), jnp.float32, -bound2, bound2)
    b2 = jax.random.uniform(k4, (1, OUT_DIM), jnp.float32, -bound2, bound2)
    return w1, b1, w2, b2


if __name__ == "__main__":
    key = jax.random.PRNGKey(0)
    kx, kp = jax.random.split(key)

    batch = 200                 # not a multiple of the tile: exercises the ragged last block
    x = jax.random.normal(kx, (batch, IN_DIM), jnp.float32)
    w1, b1, w2, b2 = init_params(kp)

    out = mlp_forward(x, w1, b1, w2, b2, tile_b=128)   # grid = 2 tiles
    out = jax.block_until_ready(out)
    assert out.shape == (batch, OUT_DIM)

    # Reference replicating the kernel's bf16-operand / f32-accumulate path.
    xb = x.astype(jnp.bfloat16).astype(jnp.float32)
    w1r = w1.astype(jnp.bfloat16).astype(jnp.float32)
    w2r = w2.astype(jnp.bfloat16).astype(jnp.float32)
    h = jnp.maximum(xb @ w1r + b1, 0.0)
    ref = h.astype(jnp.bfloat16).astype(jnp.float32) @ w2r + b2
    err = float(jnp.max(jnp.abs(out - ref)))
    assert err < 2e-2, err

    # Loose sanity check against the full-f32 PyTorch math (bf16 operands in kernel).
    ref_f32 = jnp.maximum(x @ w1 + b1, 0.0) @ w2 + b2
    assert float(jnp.max(jnp.abs(out - ref_f32))) < 0.1

    print("KERNEL_OK")
</pallas_src>

<mosaic_0001>
module attributes {stable_mosaic.version = 11 : i64} {
  func.func @mlp_kernel(%arg0: i32, %arg1: memref<128x784xf32, #tpu.memory_space<vmem>>, %arg2: memref<784x128xbf16, #tpu.memory_space<vmem>>, %arg3: memref<1x128xf32, #tpu.memory_space<vmem>>, %arg4: memref<128x10xbf16, #tpu.memory_space<vmem>>, %arg5: memref<1x10xf32, #tpu.memory_space<vmem>>, %arg6: memref<128x10xf32, #tpu.memory_space<vmem>>) attributes {dimension_semantics = [#tpu.dimension_semantics<parallel>], iteration_bounds = array<i64: 2>, scalar_prefetch = 0 : i64, scratch_operands = 0 : i64, tpu.core_type = #tpu.core_type<tc>, window_params = [{transform_indices = @transform_0, window_bounds = array<i64: 128, 784>}, {pipeline_mode = #tpu.pipeline_mode<synchronous>, transform_indices = @transform_1, window_bounds = array<i64: 784, 128>}, {pipeline_mode = #tpu.pipeline_mode<synchronous>, transform_indices = @transform_2, window_bounds = array<i64: 1, 128>}, {pipeline_mode = #tpu.pipeline_mode<synchronous>, transform_indices = @transform_3, window_bounds = array<i64: 128, 10>}, {pipeline_mode = #tpu.pipeline_mode<synchronous>, transform_indices = @transform_4, window_bounds = array<i64: 1, 10>}, {transform_indices = @transform_5, window_bounds = array<i64: 128, 10>}]} {
    %c0 = arith.constant 0 : index
    %c0_0 = arith.constant 0 : index
    %0 = vector.load %arg1[%c0, %c0_0] : memref<128x784xf32, #tpu.memory_space<vmem>>, vector<128x784xf32>
    %1 = arith.truncf %0 : vector<128x784xf32> to vector<128x784xbf16>
    %c0_1 = arith.constant 0 : index
    %c0_2 = arith.constant 0 : index
    %2 = vector.load %arg2[%c0_1, %c0_2] : memref<784x128xbf16, #tpu.memory_space<vmem>>, vector<784x128xbf16>
    %cst = arith.constant dense<0.000000e+00> : vector<128x128xf32>
    %3 = tpu.matmul %1, %2, %cst {dimension_numbers = #tpu.dot_dimension_numbers<[1], [0], [0], [1], [0, 0, 1, 1], [], []>} : vector<128x784xbf16>, vector<784x128xbf16>, vector<128x128xf32> -> vector<128x128xf32>
    %c0_3 = arith.constant 0 : index
    %c0_4 = arith.constant 0 : index
    %4 = vector.load %arg3[%c0_3, %c0_4] : memref<1x128xf32, #tpu.memory_space<vmem>>, vector<1x128xf32>
    %5 = vector.broadcast %4 : vector<1x128xf32> to vector<128x128xf32>
    %6 = arith.addf %3, %5 : vector<128x128xf32>
    %cst_5 = arith.constant 0.000000e+00 : f32
    %7 = vector.broadcast %cst_5 : f32 to vector<128x128xf32>
    %8 = arith.maximumf %6, %7 : vector<128x128xf32>
    %9 = arith.truncf %8 : vector<128x128xf32> to vector<128x128xbf16>
    %c0_6 = arith.constant 0 : index
    %c0_7 = arith.constant 0 : index
    %10 = vector.load %arg4[%c0_6, %c0_7] : memref<128x10xbf16, #tpu.memory_space<vmem>>, vector<128x10xbf16>
    %cst_8 = arith.constant dense<0.000000e+00> : vector<128x10xf32>
    %11 = tpu.matmul %9, %10, %cst_8 {dimension_numbers = #tpu.dot_dimension_numbers<[1], [0], [0], [1], [0, 0, 1, 1], [], []>} : vector<128x128xbf16>, vector<128x10xbf16>, vector<128x10xf32> -> vector<128x10xf32>
    %c0_9 = arith.constant 0 : index
    %c0_10 = arith.constant 0 : index
    %12 = vector.load %arg5[%c0_9, %c0_10] : memref<1x10xf32, #tpu.memory_space<vmem>>, vector<1x10xf32>
    %13 = vector.broadcast %12 : vector<1x10xf32> to vector<128x10xf32>
    %14 = arith.addf %11, %13 : vector<128x10xf32>
    %c0_11 = arith.constant 0 : index
    %c0_12 = arith.constant 0 : index
    %15 = vector.load %arg6[%c0_11, %c0_12] : memref<128x10xf32, #tpu.memory_space<vmem>>, vector<128x10xf32>
    tpu.vector_store %arg6[%c0_11, %c0_12], %14 {strides = array<i32>} : memref<128x10xf32, #tpu.memory_space<vmem>>, vector<128x10xf32>,
    return
  }
  func.func @transform_0(%arg0: i32) -> (i32, i32) {
    %c0_i32 = arith.constant 0 : i32
    %c0_i32_0 = arith.constant 0 : i32
    return %arg0, %c0_i32 : i32, i32
  }
  func.func @transform_1(%arg0: i32) -> (i32, i32) {
    %c0_i32 = arith.constant 0 : i32
    %c0_i32_0 = arith.constant 0 : i32
    %c0_i32_1 = arith.constant 0 : i32
    return %c0_i32, %c0_i32_0 : i32, i32
  }
  func.func @transform_2(%arg0: i32) -> (i32, i32) {
    %c0_i32 = arith.constant 0 : i32
    %c0_i32_0 = arith.constant 0 : i32
    %c0_i32_1 = arith.constant 0 : i32
    return %c0_i32, %c0_i32_0 : i32, i32
  }
  func.func @transform_3(%arg0: i32) -> (i32, i32) {
    %c0_i32 = arith.constant 0 : i32
    %c0_i32_0 = arith.constant 0 : i32
    %c0_i32_1 = arith.constant 0 : i32
    return %c0_i32, %c0_i32_0 : i32, i32
  }
  func.func @transform_4(%arg0: i32) -> (i32, i32) {
    %c0_i32 = arith.constant 0 : i32
    %c0_i32_0 = arith.constant 0 : i32
    %c0_i32_1 = arith.constant 0 : i32
    return %c0_i32, %c0_i32_0 : i32, i32
  }
  func.func @transform_5(%arg0: i32) -> (i32, i32) {
    %c0_i32 = arith.constant 0 : i32
    %c0_i32_0 = arith.constant 0 : i32
    return %arg0, %c0_i32 : i32, i32
  }
}

</mosaic_0001>

<llo_original>
// kernel: mlp_forward.1
$region0: #{mlp_forward.1}
  #allocation0 [shape = 'u32[]', space=smem, size = 0x4, offset = 0x4, fixed_abs, tag = 'smem constant byte address 0x4 - core index']
  #allocation1 [shape = 'u32[144,128]{1,0:T(1,128)}', space=vmem, size = 0x12000, scoped, tag = 'internal scratch']
  %s0 = inlined_call_operand.hbm [shape: f32[200,784], index: 0, kind: input, shape index: {}]
  %s1 = inlined_call_operand.vmem [shape: bf16[784,128], index: 1, kind: input, shape index: {}]
  %s2 = inlined_call_operand.vmem [shape: f32[1,128], index: 2, kind: input, shape index: {}]
  %s3 = inlined_call_operand.vmem [shape: bf16[128,10], index: 3, kind: input, shape index: {}]
  %s4 = inlined_call_operand.vmem [shape: f32[1,10], index: 4, kind: input, shape index: {}]
  %s5 = inlined_call_operand.vmem [shape: f32[200,10], index: 5, kind: output, shape index: {}]
  %s6 = sld [smem:[#allocation0]]
  $region105: #{mlp_forward.1} parent=0
    _
  %s8 = ssub.s32 1, %s6
  %s9 = scalar_select 0, %s8, %s6
  $region1: #{mlp_forward.1} parent=0
    #allocation2 [shape = 'u8[917504]{0}', space=vmem, size = 0xe0000, scoped, tag = 'input window, operand 0']
    #allocation3 [shape = 's32[2]{0}', space=sflag, size = 0x8, scoped, tag = 'scoped memory for mlp_forward.1']
    #allocation4 [shape = 'u8[131072]{0}', space=vmem, size = 0x20000, scoped, tag = 'output window, operand 0']
    %10 = vsyncpa [#allocation3], 0
    %s11 = scalar_lea.sflag [#allocation3], 1
    %12 = vsyncpa %s11, 0
    loop: start=0, step=1, limit=4
    $region2: #{mlp_forward.1} parent=1 // loop_pre_header
      _
    $region3: #{mlp_forward.1} parent=1 // loop_header
      %s14 = sphi 0, %s18
      %p15 = scmp.ge.s32.totalorder %s14, 4
      %s24 = sphi 0, %s26
      %s27 = sphi 0, %s24
      %s28 = sphi 0, %s27
      %s44 = sphi 0, %s28
      %s48 = sphi 0, %s48
      %s50 = sphi 0, %s48
      %s51 = sphi 0, %s50
      %s65 = sphi 0, %s51
      %s69 = sphi 0, %s69
      %s71 = sphi 0, %s69
      %s72 = sphi 0, %s71
      %s86 = sphi 0, %s72
      %s90 = sphi 0, %s90
      %s92 = sphi 0, %s90
      %s93 = sphi 0, %s92
      %s107 = sphi 0, %s93
      %s111 = sphi 0, %s111
      %s113 = sphi 0, %s111
      %s114 = sphi 0, %s113
      %s128 = sphi 0, %s114
      %s134 = sphi 0, %s136
      %s137 = sphi 0, %s134
      %s138 = sphi 0, %s137
      %s154 = sphi 0, %s138
    $region4: #{mlp_forward.1} parent=1 // loop_header_branch
      %17 = sbr.rel (%p15) target = $region8
    $region5: #{mlp_forward.1} parent=1 // loop_body
      %s19 = ssub.s32 %s14, 1
      %s20 = ssub.s32 %s14, 2
      %s21 = sadd.s32 %s14, 1
      %s22 = ssub.s32 %s14, %s21
      %p23 = scmp.eq.s32.totalorder %s22, 0
      %s25 = sadd.s32 %s24, 1
      %s26 = scalar_select %p23, %s24, %s25
      %p29 = pneg %p23
      %p30 = scmp.eq.s32.totalorder %s14, 1
      %p31 = por %p29, %p30
      %p32 = scmp.ne.s32.totalorder %s24, %s27
      %p33 = scmp.eq.s32.totalorder %s14, 0
      %p34 = por %p32, %p33
      %p35 = scmp.ne.s32.totalorder %s24, %s27
      %p36 = scmp.eq.s32.totalorder %s19, 1
      %p37 = por %p35, %p36
      %p38 = scmp.ne.s32.totalorder %s27, %s28
      %p39 = scmp.eq.s32.totalorder %s19, 0
      %p40 = por %p38, %p39
      %p41 = scmp.ne.s32.totalorder %s27, %s28
      %p42 = scmp.eq.s32.totalorder %s20, 1
      %p43 = por %p41, %p42
      %p45 = scmp.ne.s32.totalorder %s28, %s44
      %p46 = scmp.eq.s32.totalorder %s20, 0
      %p47 = por %p45, %p46
      %s49 = sadd.s32 %s48, 1
      %p52 = scmp.eq.s32.totalorder %s14, 1
      %p53 = scmp.ne.s32.totalorder %s48, %s50
      %p54 = scmp.eq.s32.totalorder %s14, 0
      %p55 = por %p53, %p54
      %p56 = scmp.ne.s32.totalorder %s48, %s50
      %p57 = scmp.eq.s32.totalorder %s19, 1
      %p58 = por %p56, %p57
      %p59 = scmp.ne.s32.totalorder %s50, %s51
      %p60 = scmp.eq.s32.totalorder %s19, 0
      %p61 = por %p59, %p60
      %p62 = scmp.ne.s32.totalorder %s50, %s51
      %p63 = scmp.eq.s32.totalorder %s20, 1
      %p64 = por %p62, %p63
      %p66 = scmp.ne.s32.totalorder %s51, %s65
      %p67 = scmp.eq.s32.totalorder %s20, 0
      %p68 = por %p66, %p67
      %s70 = sadd.s32 %s69, 1
      %p73 = scmp.eq.s32.totalorder %s14, 1
      %p74 = scmp.ne.s32.totalorder %s69, %s71
      %p75 = scmp.eq.s32.totalorder %s14, 0
      %p76 = por %p74, %p75
      %p77 = scmp.ne.s32.totalorder %s69, %s71
      %p78 = scmp.eq.s32.totalorder %s19, 1
      %p79 = por %p77, %p78
      %p80 = scmp.ne.s32.totalorder %s71, %s72
      %p81 = scmp.eq.s32.totalorder %s19, 0
      %p82 = por %p80, %p81
      %p83 = scmp.ne.s32.totalorder %s71, %s72
      %p84 = scmp.eq.s32.totalorder %s20, 1
      %p85 = por %p83, %p84
      %p87 = scmp.ne.s32.totalorder %s72, %s86
      %p88 = scmp.eq.s32.totalorder %s20, 0
      %p89 = por %p87, %p88
      %s91 = sadd.s32 %s90, 1
      %p94 = scmp.eq.s32.totalorder %s14, 1
      %p95 = scmp.ne.s32.totalorder %s90, %s92
      %p96 = scmp.eq.s32.totalorder %s14, 0
      %p97 = por %p95, %p96
      %p98 = scmp.ne.s32.totalorder %s90, %s92
      %p99 = scmp.eq.s32.totalorder %s19, 1
      %p100 = por %p98, %p99
      %p101 = scmp.ne.s32.totalorder %s92, %s93
      %p102 = scmp.eq.s32.totalorder %s19, 0
      %p103 = por %p101, %p102
      %p104 = scmp.ne.s32.totalorder %s92, %s93
      %p105 = scmp.eq.s32.totalorder %s20, 1
      %p106 = por %p104, %p105
      %p108 = scmp.ne.s32.totalorder %s93, %s107
      %p109 = scmp.eq.s32.totalorder %s20, 0
      %p110 = por %p108, %p109
      %s112 = sadd.s32 %s111, 1
      %p115 = scmp.eq.s32.totalorder %s14, 1
      %p116 = scmp.ne.s32.totalorder %s111, %s113
      %p117 = scmp.eq.s32.totalorder %s14, 0
      %p118 = por %p116, %p117
      %p119 = scmp.ne.s32.totalorder %s111, %s113
      %p120 = scmp.eq.s32.totalorder %s19, 1
      %p121 = por %p119, %p120
      %p122 = scmp.ne.s32.totalorder %s113, %s114
      %p123 = scmp.eq.s32.totalorder %s19, 0
      %p124 = por %p122, %p123
      %p125 = scmp.ne.s32.totalorder %s113, %s114
      %p126 = scmp.eq.s32.totalorder %s20, 1
      %p127 = por %p125, %p126
      %p129 = scmp.ne.s32.totalorder %s114, %s128
      %p130 = scmp.eq.s32.totalorder %s20, 0
      %p131 = por %p129, %p130
      %s132 = ssub.s32 %s14, %s21
      %p133 = scmp.eq.s32.totalorder %s132, 0
      %s135 = sadd.s32 %s134, 1
      %s136 = scalar_select %p133, %s134, %s135
      %p139 = pneg %p133
      %p140 = scmp.eq.s32.totalorder %s14, 1
      %p141 = por %p139, %p140
      %p142 = scmp.ne.s32.totalorder %s134, %s137
      %p143 = scmp.eq.s32.totalorder %s14, 0
      %p144 = por %p142, %p143
      %p145 = scmp.ne.s32.totalorder %s134, %s137
      %p146 = scmp.eq.s32.totalorder %s19, 1
      %p147 = por %p145, %p146
      %p148 = scmp.ne.s32.totalorder %s137, %s138
      %p149 = scmp.eq.s32.totalorder %s19, 0
      %p150 = por %p148, %p149
      %p151 = scmp.ne.s32.totalorder %s137, %s138
      %p152 = scmp.eq.s32.totalorder %s20, 1
      %p153 = por %p151, %p152
      %p155 = scmp.ne.s32.totalorder %s138, %s154
      %p156 = scmp.eq.s32.totalorder %s20, 0
      %p157 = por %p155, %p156
      %p158 = scmp.le.s32.totalorder 1, %s14
      %p159 = scmp.lt.s32.totalorder %s14, 3
      %p160 = pnand %p158, %p159
      %p161 = pneg %p160
      // Predicated region
      $region9: #{mlp_forward.1} parent=5 // pred_check
        _
      $region10: #{mlp_forward.1} parent=5 // pred_check_branch
        %163 = sbr.rel (%p160) target = $region12
      $region11: #{mlp_forward.1} parent=5 // pred_region
        %s164 = ssub.s32 %s14, 1
        // Predicated region
        $region13: #{mlp_forward.1} parent=11 // pred_check
          %p165 = pneg %p61
        $region14: #{mlp_forward.1} parent=11 // pred_check_branch
          %167 = sbr.rel (%p165) target = $region16
        $region15: #{mlp_forward.1} parent=11 // pred_region
          _
        $region16: #{mlp_forward.1} parent=11 // pred_fallthru
          _
        // Predicated region
        $region17: #{mlp_forward.1} parent=11 // pred_check
          %p168 = pneg %p82
        $region18: #{mlp_forward.1} parent=11 // pred_check_branch
          %170 = sbr.rel (%p168) target = $region20
        $region19: #{mlp_forward.1} parent=11 // pred_region
          _
        $region20: #{mlp_forward.1} parent=11 // pred_fallthru
          _
        // Predicated region
        $region21: #{mlp_forward.1} parent=11 // pred_check
          %p171 = pneg %p103
        $region22: #{mlp_forward.1} parent=11 // pred_check_branch
          %173 = sbr.rel (%p171) target = $region24
        $region23: #{mlp_forward.1} parent=11 // pred_region
          _
        $region24: #{mlp_forward.1} parent=11 // pred_fallthru
          _
        // Predicated region
        $region25: #{mlp_forward.1} parent=11 // pred_check
          %p174 = pneg %p124
        $region26: #{mlp_forward.1} parent=11 // pred_check_branch
          %176 = sbr.rel (%p174) target = $region28
        $region27: #{mlp_forward.1} parent=11 // pred_region
          _
        $region28: #{mlp_forward.1} parent=11 // pred_fallthru
          _
      $region12: #{mlp_forward.1} parent=5 // pred_fallthru
        _
      %p177 = scmp.lt.s32.totalorder %s14, 2
      // Predicated region
      $region29: #{mlp_forward.1} parent=5 // pred_check
        %p178 = pneg %p177
      $region30: #{mlp_forward.1} parent=5 // pred_check_branch
        %180 = sbr.rel (%p178) target = $region32
      $region31: #{mlp_forward.1} parent=5 // pred_region
        // Predicated region
        $region33: #{mlp_forward.1} parent=31 // pred_check
          %p181 = pneg %p34
        $region34: #{mlp_forward.1} parent=31 // pred_check_branch
          %183 = sbr.rel (%p181) target = $region36
        $region35: #{mlp_forward.1} parent=31 // pred_region
          %s184 = sand.u32 %s24, 1
          %s185 = scalar_lea.sflag [#allocation3], %s184
          %s186 = sand.u32 %s24, 1
          %s187 = smul.addr %s186, 896
          %s188 = scalar_lea.vmem [#allocation2], %s187
          %s189 = smul.u32 16, %s14
          %s190 = ssub.s32 25, %s189
          %p191 = scmp.lt.s32.totalorder %s190, 16
          %s192 = scalar_select %p191, %s190, 16
          %s193 = smul.u32 128, %s192
          %s194 = smul.u32 %s193, 7
          %s196 = ssub.s32 14336, %s194
          %197 = vsyncadd %s185, %s196
          %p198 = scmp.ne.s32.totalorder 0, %s194
          %s199 = smul.addr %s189, 7
          %s200 = smul.addr %s199, 128
          %s201 = scalar_lea.hbm %s0, %s200
          %s202 = smul.u32 56, %s192
          %s203 = sshll.u32 %s188, 4
          %s204 = int_to_ptr.vmem [resolvable:$true] %s203
          %s205 = sshll.u32 %s202, 4
          %209 = dma.hbm_to_vmem [thread:$0]  (%p198), %s201, %s205, %s204, %s185, 896, 896, 56
        $region36: #{mlp_forward.1} parent=31 // pred_fallthru
          _
      $region32: #{mlp_forward.1} parent=5 // pred_fallthru
        _
      %p210 = scmp.le.s32.totalorder 1, %s14
      %p211 = scmp.lt.s32.totalorder %s14, 3
      %p212 = pnand %p210, %p211
      %p213 = pneg %p212
      // Predicated region
      $region37: #{mlp_forward.1} parent=5 // pred_check
        _
      $region38: #{mlp_forward.1} parent=5 // pred_check_branch
        %215 = sbr.rel (%p212) target = $region40
      $region39: #{mlp_forward.1} parent=5 // pred_region
        %s216 = ssub.s32 %s14, 1
        %s217 = sand.u32 %s27, 1
        %s218 = scalar_lea.sflag [#allocation3], %s217
        %s219 = sand.u32 %s27, 1
        %s220 = smul.addr %s219, 896
        %s221 = scalar_lea.vmem [#allocation2], %s220
        // Predicated region
        $region41: #{mlp_forward.1} parent=39 // pred_check
          %p222 = pneg %p40
        $region42: #{mlp_forward.1} parent=39 // pred_check_branch
          %224 = sbr.rel (%p222) target = $region44
        $region43: #{mlp_forward.1} parent=39 // pred_region
          %225 = dma.done %s218, 14336
        $region44: #{mlp_forward.1} parent=39 // pred_fallthru
          _
        %s226 = sand.u32 %s27, 1
        %s227 = scalar_lea.sflag [#allocation3], %s226
        %s228 = sand.u32 %s27, 1
        %s229 = smul.addr %s228, 896
        %s230 = scalar_lea.vmem [#allocation2], %s229
        %p231 = pneg %p40
        %p232 = pneg %p37
        %p233 = pneg %p61
        %p234 = pneg %p58
        %p235 = pneg %p82
        %p236 = pneg %p79
        %p237 = pneg %p103
        %p238 = pneg %p100
        %p239 = pneg %p124
        %p240 = pneg %p121
        %p241 = pneg %p150
        %p242 = pneg %p147
        %s243 = sand.u32 %s137, 1
        %s244 = sand.u32 %s137, 1
        %s245 = smul.addr %s244, 128
        %s246 = scalar_lea.vmem [#allocation4], %s245
        %s247 = smul.u32 16, %s19
        %s248 = ssub.s32 25, %s247
        %p249 = scmp.lt.s32.totalorder %s248, 16
        %s250 = scalar_select %p249, %s248, 16
        %s251 = smul.u32 128, %s250
        %s252 = smul.u32 %s251, 7
        %s253 = smul.u32 16, %s19
        %s254 = ssub.s32 25, %s253
        %p255 = scmp.lt.s32.totalorder %s254, 16
        %s256 = scalar_select %p255, %s254, 16
        %s257 = smul.u32 128, %s256
        %v259 = vld [vmem:[%s221] sm:$0xff]
        %v260 = vld [vmem:[%s221 + $0x8] sm:$0xff]
        %v261 = vld [vmem:[%s221 + $0x10] sm:$0xff]
        %v262 = vld [vmem:[%s221 + $0x18] sm:$0xff]
        %v263 = vld [vmem:[%s221 + $0x20] sm:$0xff]
        %v264 = vld [vmem:[%s221 + $0x28] sm:$0xff]
        %v265 = vld [vmem:[%s221 + $0x30] sm:$0xff]
        %v266 = vld [vmem:[%s221 + $0x38] sm:$0xff]
        %v267 = vld [vmem:[%s221 + $0x40] sm:$0xff]
        %v268 = vld [vmem:[%s221 + $0x48] sm:$0xff]
        %v269 = vld [vmem:[%s221 + $0x50] sm:$0xff]
        %v270 = vld [vmem:[%s221 + $0x58] sm:$0xff]
        %v271 = vld [vmem:[%s221 + $0x60] sm:$0xff]
        %v272 = vld [vmem:[%s221 + $0x68] sm:$0xff]
        %v273 = vld [vmem:[%s221 + $0x70] sm:$0xff]
        %v274 = vld [vmem:[%s221 + $0x78] sm:$0xff]
        %v275 = vld [vmem:[%s221 + $0x80] sm:$0xff]
        %v276 = vld [vmem:[%s221 + $0x88] sm:$0xff]
        %v277 = vld [vmem:[%s221 + $0x90] sm:$0xff]
        %v278 = vld [vmem:[%s221 + $0x98] sm:$0xff]
        %v279 = vld [vmem:[%s221 + $0xa0] sm:$0xff]
        %v280 = vld [vmem:[%s221 + $0xa8] sm:$0xff]
        %v281 = vld [vmem:[%s221 + $0xb0] sm:$0xff]
        %v282 = vld [vmem:[%s221 + $0xb8] sm:$0xff]
        %v283 = vld [vmem:[%s221 + $0xc0] sm:$0xff]
        %v284 = vld [vmem:[%s221 + $0xc8] sm:$0xff]
        %v285 = vld [vmem:[%s221 + $0xd0] sm:$0xff]
        %v286 = vld [vmem:[%s221 + $0xd8] sm:$0xff]
        %v287 = vld [vmem:[%s221 + $0xe0] sm:$0xff]
        %v288 = vld [vmem:[%s221 + $0xe8] sm:$0xff]
        %v289 = vld [vmem:[%s221 + $0xf0] sm:$0xff]
        %v290 = vld [vmem:[%s221 + $0xf8] sm:$0xff]
        %v291 = vld [vmem:[%s221 + $0x100] sm:$0xff]
        %v292 = vld [vmem:[%s221 + $0x108] sm:$0xff]
        %v293 = vld [vmem:[%s221 + $0x110] sm:$0xff]
        %v294 = vld [vmem:[%s221 + $0x118] sm:$0xff]
        %v295 = vld [vmem:[%s221 + $0x120] sm:$0xff]
        %v296 = vld [vmem:[%s221 + $0x128] sm:$0xff]
        %v297 = vld [vmem:[%s221 + $0x130] sm:$0xff]
        %v298 = vld [vmem:[%s221 + $0x138] sm:$0xff]
        %v299 = vld [vmem:[%s221 + $0x140] sm:$0xff]
        %v300 = vld [vmem:[%s221 + $0x148] sm:$0xff]
        %v301 = vld [vmem:[%s221 + $0x150] sm:$0xff]
        %v302 = vld [vmem:[%s221 + $0x158] sm:$0xff]
        %v303 = vld [vmem:[%s221 + $0x160] sm:$0xff]
        %v304 = vld [vmem:[%s221 + $0x168] sm:$0xff]
        %v305 = vld [vmem:[%s221 + $0x170] sm:$0xff]
        %v306 = vld [vmem:[%s221 + $0x178] sm:$0xff]
        %v307 = vld [vmem:[%s221 + $0x180] sm:$0xff]
        %v308 = vld [vmem:[%s221 + $0x188] sm:$0xff]
        %v309 = vld [vmem:[%s221 + $0x190] sm:$0xff]
        %v310 = vld [vmem:[%s221 + $0x198] sm:$0xff]
        %v311 = vld [vmem:[%s221 + $0x1a0] sm:$0xff]
        %v312 = vld [vmem:[%s221 + $0x1a8] sm:$0xff]
        %v313 = vld [vmem:[%s221 + $0x1b0] sm:$0xff]
        %v314 = vld [vmem:[%s221 + $0x1b8] sm:$0xff]
        %v315 = vld [vmem:[%s221 + $0x1c0] sm:$0xff]
        %v316 = vld [vmem:[%s221 + $0x1c8] sm:$0xff]
        %v317 = vld [vmem:[%s221 + $0x1d0] sm:$0xff]
        %v318 = vld [vmem:[%s221 + $0x1d8] sm:$0xff]
        %v319 = vld [vmem:[%s221 + $0x1e0] sm:$0xff]
        %v320 = vld [vmem:[%s221 + $0x1e8] sm:$0xff]
        %v321 = vld [vmem:[%s221 + $0x1f0] sm:$0xff]
        %v322 = vld [vmem:[%s221 + $0x1f8] sm:$0xff]
        %v323 = vld [vmem:[%s221 + $0x200] sm:$0xff]
        %v324 = vld [vmem:[%s221 + $0x208] sm:$0xff]
        %v325 = vld [vmem:[%s221 + $0x210] sm:$0xff]
        %v326 = vld [vmem:[%s221 + $0x218] sm:$0xff]
        %v327 = vld [vmem:[%s221 + $0x220] sm:$0xff]
        %v328 = vld [vmem:[%s221 + $0x228] sm:$0xff]
        %v329 = vld [vmem:[%s221 + $0x230] sm:$0xff]
        %v330 = vld [vmem:[%s221 + $0x238] sm:$0xff]
        %v331 = vld [vmem:[%s221 + $0x240] sm:$0xff]
        %v332 = vld [vmem:[%s221 + $0x248] sm:$0xff]
        %v333 = vld [vmem:[%s221 + $0x250] sm:$0xff]
        %v334 = vld [vmem:[%s221 + $0x258] sm:$0xff]
        %v335 = vld [vmem:[%s221 + $0x260] sm:$0xff]
        %v336 = vld [vmem:[%s221 + $0x268] sm:$0xff]
        %v337 = vld [vmem:[%s221 + $0x270] sm:$0xff]
        %v338 = vld [vmem:[%s221 + $0x278] sm:$0xff]
        %v339 = vld [vmem:[%s221 + $0x280] sm:$0xff]
        %v340 = vld [vmem:[%s221 + $0x288] sm:$0xff]
        %v341 = vld [vmem:[%s221 + $0x290] sm:$0xff]
        %v342 = vld [vmem:[%s221 + $0x298] sm:$0xff]
        %v343 = vld [vmem:[%s221 + $0x2a0] sm:$0xff]
        %v344 = vld [vmem:[%s221 + $0x2a8] sm:$0xff]
        %v345 = vld [vmem:[%s221 + $0x2b0] sm:$0xff]
        %v346 = vld [vmem:[%s221 + $0x2b8] sm:$0xff]
        %v347 = vld [vmem:[%s221 + $0x2c0] sm:$0xff]
        %v348 = vld [vmem:[%s221 + $0x2c8] sm:$0xff]
        %v349 = vld [vmem:[%s221 + $0x2d0] sm:$0xff]
        %v350 = vld [vmem:[%s221 + $0x2d8] sm:$0xff]
        %v351 = vld [vmem:[%s221 + $0x2e0] sm:$0xff]
        %v352 = vld [vmem:[%s221 + $0x2e8] sm:$0xff]
        %v353 = vld [vmem:[%s221 + $0x2f0] sm:$0xff]
        %v354 = vld [vmem:[%s221 + $0x2f8] sm:$0xff]
        %v355 = vld [vmem:[%s221 + $0x300] sm:$0xff]
        %v356 = vld [vmem:[%s221 + $0x308] sm:$0xff]
        %v357 = vld [vmem:[%s221 + $0x310] sm:$0xff]
        %v358 = vld [vmem:[%s221 + $0x318] sm:$0xff]
        %v359 = vld [vmem:[%s221 + $0x320] sm:$0xff]
        %v360 = vld [vmem:[%s221 + $0x328] sm:$0xff]
        %v361 = vld [vmem:[%s221 + $0x330] sm:$0xff]
        %v362 = vld [vmem:[%s221 + $0x338] sm:$0xff]
        %v363 = vld [vmem:[%s221 + $0x340] sm:$0xff]
        %v364 = vld [vmem:[%s221 + $0x348] sm:$0xff]
        %v365 = vld [vmem:[%s221 + $0x350] sm:$0xff]
        %v366 = vld [vmem:[%s221 + $0x358] sm:$0xff]
        %v367 = vld [vmem:[%s221 + $0x360] sm:$0xff]
        %v368 = vld [vmem:[%s221 + $0x368] sm:$0xff]
        %v369 = vld [vmem:[%s221 + $0x370] sm:$0xff]
        %v370 = vld [vmem:[%s221 + $0x378] sm:$0xff]
        %v371 = vpack.c.bf16 %v266, %v259
        %v372 = vpack.c.bf16 %v267, %v260
        %v373 = vpack.c.bf16 %v268, %v261
        %v374 = vpack.c.bf16 %v269, %v262
        %v375 = vpack.c.bf16 %v270, %v263
        %v376 = vpack.c.bf16 %v271, %v264
        %v377 = vpack.c.bf16 %v272, %v265
        %v378 = vpack.c.bf16 %v280, %v273
        %v379 = vpack.c.bf16 %v281, %v274
        %v380 = vpack.c.bf16 %v282, %v275
        %v381 = vpack.c.bf16 %v283, %v276
        %v382 = vpack.c.bf16 %v284, %v277
        %v383 = vpack.c.bf16 %v285, %v278
        %v384 = vpack.c.bf16 %v286, %v279
        %v385 = vpack.c.bf16 %v294, %v287
        %v386 = vpack.c.bf16 %v295, %v288
        %v387 = vpack.c.bf16 %v296, %v289
        %v388 = vpack.c.bf16 %v297, %v290
        %v389 = vpack.c.bf16 %v298, %v291
        %v390 = vpack.c.bf16 %v299, %v292
        %v391 = vpack.c.bf16 %v300, %v293
        %v392 = vpack.c.bf16 %v308, %v301
        %v393 = vpack.c.bf16 %v309, %v302
        %v394 = vpack.c.bf16 %v310, %v303
        %v395 = vpack.c.bf16 %v311, %v304
        %v396 = vpack.c.bf16 %v312, %v305
        %v397 = vpack.c.bf16 %v313, %v306
        %v398 = vpack.c.bf16 %v314, %v307
        %v399 = vpack.c.bf16 %v322, %v315
        %v400 = vpack.c.bf16 %v323, %v316
        %v401 = vpack.c.bf16 %v324, %v317
        %v402 = vpack.c.bf16 %v325, %v318
        %v403 = vpack.c.bf16 %v326, %v319
        %v404 = vpack.c.bf16 %v327, %v320
        %v405 = vpack.c.bf16 %v328, %v321
        %v406 = vpack.c.bf16 %v336, %v329
        %v407 = vpack.c.bf16 %v337, %v330
        %v408 = vpack.c.bf16 %v338, %v331
        %v409 = vpack.c.bf16 %v339, %v332
        %v410 = vpack.c.bf16 %v340, %v333
        %v411 = vpack.c.bf16 %v341, %v334
        %v412 = vpack.c.bf16 %v342, %v335
        %v413 = vpack.c.bf16 %v350, %v343
        %v414 = vpack.c.bf16 %v351, %v344
        %v415 = vpack.c.bf16 %v352, %v345
        %v416 = vpack.c.bf16 %v353, %v346
        %v417 = vpack.c.bf16 %v354, %v347
        %v418 = vpack.c.bf16 %v355, %v348
        %v419 = vpack.c.bf16 %v356, %v349
        %v420 = vpack.c.bf16 %v364, %v357
        %v421 = vpack.c.bf16 %v365, %v358
        %v422 = vpack.c.bf16 %v366, %v359
        %v423 = vpack.c.bf16 %v367, %v360
        %v424 = vpack.c.bf16 %v368, %v361
        %v425 = vpack.c.bf16 %v369, %v362
        %v426 = vpack.c.bf16 %v370, %v363
        %v427 = vld [vmem:[%s1] sm:$0xf]
        %v428 = vld [vmem:[%s1 + $0x4] sm:$0xf]
        %v429 = vld [vmem:[%s1 + $0x8] sm:$0xf]
        %v430 = vld [vmem:[%s1 + $0xc] sm:$0xf]
        %v431 = vld [vmem:[%s1 + $0x10] sm:$0xf]
        %v432 = vld [vmem:[%s1 + $0x14] sm:$0xf]
        %v433 = vld [vmem:[%s1 + $0x18] sm:$0xf]
        %v434 = vld [vmem:[%s1 + $0x1c] sm:$0xf]
        %v435 = vld [vmem:[%s1 + $0x20] sm:$0xf]
        %v436 = vld [vmem:[%s1 + $0x24] sm:$0xf]
        %v437 = vld [vmem:[%s1 + $0x28] sm:$0xf]
        %v438 = vld [vmem:[%s1 + $0x2c] sm:$0xf]
        %v439 = vld [vmem:[%s1 + $0x30] sm:$0xf]
        %v440 = vld [vmem:[%s1 + $0x34] sm:$0xf]
        %v441 = vld [vmem:[%s1 + $0x38] sm:$0xf]
        %v442 = vld [vmem:[%s1 + $0x3c] sm:$0xf]
        %v443 = vld [vmem:[%s1 + $0x40] sm:$0xf]
        %v444 = vld [vmem:[%s1 + $0x44] sm:$0xf]
        %v445 = vld [vmem:[%s1 + $0x48] sm:$0xf]
        %v446 = vld [vmem:[%s1 + $0x4c] sm:$0xf]
        %v447 = vld [vmem:[%s1 + $0x50] sm:$0xf]
        %v448 = vld [vmem:[%s1 + $0x54] sm:$0xf]
        %v449 = vld [vmem:[%s1 + $0x58] sm:$0xf]
        %v450 = vld [vmem:[%s1 + $0x5c] sm:$0xf]
        %v451 = vld [vmem:[%s1 + $0x60] sm:$0xf]
        %v452 = vld [vmem:[%s1 + $0x64] sm:$0xf]
        %v453 = vld [vmem:[%s1 + $0x68] sm:$0xf]
        %v454 = vld [vmem:[%s1 + $0x6c] sm:$0xf]
        %v455 = vld [vmem:[%s1 + $0x70] sm:$0xf]
        %v456 = vld [vmem:[%s1 + $0x74] sm:$0xf]
        %v457 = vld [vmem:[%s1 + $0x78] sm:$0xf]
        %v458 = vld [vmem:[%s1 + $0x7c] sm:$0xf]
        %v459 = vld [vmem:[%s1 + $0x80] sm:$0xf]
        %v460 = vld [vmem:[%s1 + $0x84] sm:$0xf]
        %v461 = vld [vmem:[%s1 + $0x88] sm:$0xf]
        %v462 = vld [vmem:[%s1 + $0x8c] sm:$0xf]
        %v463 = vld [vmem:[%s1 + $0x90] sm:$0xf]
        %v464 = vld [vmem:[%s1 + $0x94] sm:$0xf]
        %v465 = vld [vmem:[%s1 + $0x98] sm:$0xf]
        %v466 = vld [vmem:[%s1 + $0x9c] sm:$0xf]
        %v467 = vld [vmem:[%s1 + $0xa0] sm:$0xf]
        %v468 = vld [vmem:[%s1 + $0xa4] sm:$0xf]
        %v469 = vld [vmem:[%s1 + $0xa8] sm:$0xf]
        %v470 = vld [vmem:[%s1 + $0xac] sm:$0xf]
        %v471 = vld [vmem:[%s1 + $0xb0] sm:$0xf]
        %v472 = vld [vmem:[%s1 + $0xb4] sm:$0xf]
        %v473 = vld [vmem:[%s1 + $0xb8] sm:$0xf]
        %v474 = vld [vmem:[%s1 + $0xbc] sm:$0xf]
        %v475 = vld [vmem:[%s1 + $0xc0] sm:$0xf]
        %v476 = vld [vmem:[%s1 + $0xc4] sm:$0xf]
        %v477 = vld [vmem:[%s1 + $0xc8] sm:$0xf]
        %v478 = vld [vmem:[%s1 + $0xcc] sm:$0xf]
        %v479 = vld [vmem:[%s1 + $0xd0] sm:$0xf]
        %v480 = vld [vmem:[%s1 + $0xd4] sm:$0xf]
        %v481 = vld [vmem:[%s1 + $0xd8] sm:$0xf]
        %v482 = vld [vmem:[%s1 + $0xdc] sm:$0xf]
        %v483 = vld [vmem:[%s1 + $0xe0] sm:$0xf]
        %v484 = vld [vmem:[%s1 + $0xe4] sm:$0xf]
        %v485 = vld [vmem:[%s1 + $0xe8] sm:$0xf]
        %v486 = vld [vmem:[%s1 + $0xec] sm:$0xf]
        %v487 = vld [vmem:[%s1 + $0xf0] sm:$0xf]
        %v488 = vld [vmem:[%s1 + $0xf4] sm:$0xf]
        %v489 = vld [vmem:[%s1 + $0xf8] sm:$0xf]
        %v490 = vld [vmem:[%s1 + $0xfc] sm:$0xf]
        %v491 = vld [vmem:[%s1 + $0x100] sm:$0xf]
        %v492 = vld [vmem:[%s1 + $0x104] sm:$0xf]
        %v493 = vld [vmem:[%s1 + $0x108] sm:$0xf]
        %v494 = vld [vmem:[%s1 + $0x10c] sm:$0xf]
        %v495 = vld [vmem:[%s1 + $0x110] sm:$0xf]
        %v496 = vld [vmem:[%s1 + $0x114] sm:$0xf]
        %v497 = vld [vmem:[%s1 + $0x118] sm:$0xf]
        %v498 = vld [vmem:[%s1 + $0x11c] sm:$0xf]
        %v499 = vld [vmem:[%s1 + $0x120] sm:$0xf]
        %v500 = vld [vmem:[%s1 + $0x124] sm:$0xf]
        %v501 = vld [vmem:[%s1 + $0x128] sm:$0xf]
        %v502 = vld [vmem:[%s1 + $0x12c] sm:$0xf]
        %v503 = vld [vmem:[%s1 + $0x130] sm:$0xf]
        %v504 = vld [vmem:[%s1 + $0x134] sm:$0xf]
        %v505 = vld [vmem:[%s1 + $0x138] sm:$0xf]
        %v506 = vld [vmem:[%s1 + $0x13c] sm:$0xf]
        %v507 = vld [vmem:[%s1 + $0x140] sm:$0xf]
        %v508 = vld [vmem:[%s1 + $0x144] sm:$0xf]
        %v509 = vld [vmem:[%s1 + $0x148] sm:$0xf]
        %v510 = vld [vmem:[%s1 + $0x14c] sm:$0xf]
        %v511 = vld [vmem:[%s1 + $0x150] sm:$0xf]
        %v512 = vld [vmem:[%s1 + $0x154] sm:$0xf]
        %v513 = vld [vmem:[%s1 + $0x158] sm:$0xf]
        %v514 = vld [vmem:[%s1 + $0x15c] sm:$0xf]
        %v515 = vld [vmem:[%s1 + $0x160] sm:$0xf]
        %v516 = vld [vmem:[%s1 + $0x164] sm:$0xf]
        %v517 = vld [vmem:[%s1 + $0x168] sm:$0xf]
        %v518 = vld [vmem:[%s1 + $0x16c] sm:$0xf]
        %v519 = vld [vmem:[%s1 + $0x170] sm:$0xf]
        %v520 = vld [vmem:[%s1 + $0x174] sm:$0xf]
        %v521 = vld [vmem:[%s1 + $0x178] sm:$0xf]
        %v522 = vld [vmem:[%s1 + $0x17c] sm:$0xf]
        %v523 = vld [vmem:[%s1 + $0x180] sm:$0xf]
        %v524 = vld [vmem:[%s1 + $0x184] sm:$0xf]
        %v525 = vld [vmem:[%s2] sm:$0x1]
        %v527 = vlaneseq
        %v528 = vshrl.u32 %v527, 7
        %v529 = vsub.s32 0, %v528
        %v530 = vrot.slane %v525, %v529
        %v630 = vunpack.c.l.b16 %v427
        %v631 = vunpack.c.l.b16 %v428
        %v632 = vunpack.c.l.b16 %v429
        %v633 = vunpack.c.l.b16 %v430
        %v634 = vunpack.c.l.b16 %v431
        %v635 = vunpack.c.l.b16 %v432
        %v636 = vunpack.c.l.b16 %v433
        %v637 = vunpack.c.l.b16 %v434
        %v638 = vunpack.c.l.b16 %v435
        %v639 = vunpack.c.l.b16 %v436
        %v640 = vunpack.c.l.b16 %v437
        %v641 = vunpack.c.l.b16 %v438
        %v642 = vunpack.c.l.b16 %v439
        %v643 = vunpack.c.l.b16 %v440
        %v644 = vunpack.c.l.b16 %v441
        %v645 = vunpack.c.l.b16 %v442
        %v646 = vunpack.c.l.b16 %v443
        %v647 = vunpack.c.l.b16 %v444
        %v648 = vunpack.c.l.b16 %v445
        %v649 = vunpack.c.l.b16 %v446
        %v650 = vunpack.c.l.b16 %v447
        %v651 = vunpack.c.l.b16 %v448
        %v652 = vunpack.c.l.b16 %v449
        %v653 = vunpack.c.l.b16 %v450
        %v654 = vunpack.c.l.b16 %v451
        %v655 = vunpack.c.l.b16 %v452
        %v656 = vunpack.c.l.b16 %v453
        %v657 = vunpack.c.l.b16 %v454
        %v658 = vunpack.c.l.b16 %v455
        %v659 = vunpack.c.l.b16 %v456
        %v660 = vunpack.c.l.b16 %v457
        %v661 = vunpack.c.l.b16 %v458
        %v662 = vunpack.c.l.b16 %v459
        %v663 = vunpack.c.l.b16 %v460
        %v664 = vunpack.c.l.b16 %v461
        %v665 = vunpack.c.l.b16 %v462
        %v666 = vunpack.c.l.b16 %v463
        %v667 = vunpack.c.l.b16 %v464
        %v668 = vunpack.c.l.b16 %v465
        %v669 = vunpack.c.l.b16 %v466
        %v670 = vunpack.c.l.b16 %v467
        %v671 = vunpack.c.l.b16 %v468
        %v672 = vunpack.c.l.b16 %v469
        %v673 = vunpack.c.l.b16 %v470
        %v674 = vunpack.c.l.b16 %v471
        %v675 = vunpack.c.l.b16 %v472
        %v676 = vunpack.c.l.b16 %v473
        %v677 = vunpack.c.l.b16 %v474
        %v678 = vunpack.c.l.b16 %v475
        %v679 = vunpack.c.l.b16 %v476
        %v680 = vunpack.c.l.b16 %v477
        %v681 = vunpack.c.l.b16 %v478
        %v682 = vunpack.c.l.b16 %v479
        %v683 = vunpack.c.l.b16 %v480
        %v684 = vunpack.c.l.b16 %v481
        %v685 = vunpack.c.l.b16 %v482
        %v686 = vunpack.c.l.b16 %v483
        %v687 = vunpack.c.l.b16 %v484
        %v688 = vunpack.c.l.b16 %v485
        %v689 = vunpack.c.l.b16 %v486
        %v690 = vunpack.c.l.b16 %v487
        %v691 = vunpack.c.l.b16 %v488
        %v692 = vunpack.c.l.b16 %v489
        %v693 = vunpack.c.l.b16 %v490
        %v694 = vunpack.c.l.b16 %v491
        %v695 = vunpack.c.l.b16 %v492
        %v696 = vunpack.c.l.b16 %v493
        %v697 = vunpack.c.l.b16 %v494
        %v698 = vunpack.c.l.b16 %v495
        %v699 = vunpack.c.l.b16 %v496
        %v700 = vunpack.c.l.b16 %v497
        %v701 = vunpack.c.l.b16 %v498
        %v702 = vunpack.c.l.b16 %v499
        %v703 = vunpack.c.l.b16 %v500
        %v704 = vunpack.c.l.b16 %v501
        %v705 = vunpack.c.l.b16 %v502
        %v706 = vunpack.c.l.b16 %v503
        %v707 = vunpack.c.l.b16 %v504
        %v708 = vunpack.c.l.b16 %v505
        %v709 = vunpack.c.l.b16 %v506
        %v710 = vunpack.c.l.b16 %v507
        %v711 = vunpack.c.l.b16 %v508
        %v712 = vunpack.c.l.b16 %v509
        %v713 = vunpack.c.l.b16 %v510
        %v714 = vunpack.c.l.b16 %v511
        %v715 = vunpack.c.l.b16 %v512
        %v716 = vunpack.c.l.b16 %v513
        %v717 = vunpack.c.l.b16 %v514
        %v718 = vunpack.c.l.b16 %v515
        %v719 = vunpack.c.l.b16 %v516
        %v720 = vunpack.c.l.b16 %v517
        %v721 = vunpack.c.l.b16 %v518
        %v722 = vunpack.c.l.b16 %v519
        %v723 = vunpack.c.l.b16 %v520
        %v724 = vunpack.c.l.b16 %v521
        %v725 = vunpack.c.l.b16 %v522
        %v726 = vunpack.c.l.b16 %v523
        %v727 = vunpack.c.l.b16 %v524
        %v728 = vpack.c.b16 %v631, %v630
        %v729 = vpack.c.b16 %v633, %v632
        %v730 = vpack.c.b16 %v635, %v634
        %v731 = vpack.c.b16 %v637, %v636
        %v732 = vpack.c.b16 %v639, %v638
        %v733 = vpack.c.b16 %v641, %v640
        %v734 = vpack.c.b16 %v643, %v642
        %v735 = vpack.c.b16 %v645, %v644
        %v736 = vpack.c.b16 %v647, %v646
        %v737 = vpack.c.b16 %v649, %v648
        %v738 = vpack.c.b16 %v651, %v650
        %v739 = vpack.c.b16 %v653, %v652
        %v740 = vpack.c.b16 %v655, %v654
        %v741 = vpack.c.b16 %v657, %v656
        %v742 = vpack.c.b16 %v659, %v658
        %v743 = vpack.c.b16 %v661, %v660
        %v744 = vpack.c.b16 %v663, %v662
        %v745 = vpack.c.b16 %v665, %v664
        %v746 = vpack.c.b16 %v667, %v666
        %v747 = vpack.c.b16 %v669, %v668
        %v748 = vpack.c.b16 %v671, %v670
        %v749 = vpack.c.b16 %v673, %v672
        %v750 = vpack.c.b16 %v675, %v674
        %v751 = vpack.c.b16 %v677, %v676
        %v752 = vpack.c.b16 %v679, %v678
        %v753 = vpack.c.b16 %v681, %v680
        %v754 = vpack.c.b16 %v683, %v682
        %v755 = vpack.c.b16 %v685, %v684
        %v756 = vpack.c.b16 %v687, %v686
        %v757 = vpack.c.b16 %v689, %v688
        %v758 = vpack.c.b16 %v691, %v690
        %v759 = vpack.c.b16 %v693, %v692
        %v760 = vpack.c.b16 %v695, %v694
        %v761 = vpack.c.b16 %v697, %v696
        %v762 = vpack.c.b16 %v699, %v698
        %v763 = vpack.c.b16 %v701, %v700
        %v764 = vpack.c.b16 %v703, %v702
        %v765 = vpack.c.b16 %v705, %v704
        %v766 = vpack.c.b16 %v707, %v706
        %v767 = vpack.c.b16 %v709, %v708
        %v768 = vpack.c.b16 %v711, %v710
        %v769 = vpack.c.b16 %v713, %v712
        %v770 = vpack.c.b16 %v715, %v714
        %v771 = vpack.c.b16 %v717, %v716
        %v772 = vpack.c.b16 %v719, %v718
        %v773 = vpack.c.b16 %v721, %v720
        %v774 = vpack.c.b16 %v723, %v722
        %v775 = vpack.c.b16 %v725, %v724
        %v776 = vpack.c.b16 %v727, %v726
        %vm826 = vcmask 130048
        %v828 = vsel %vm826, %v377, 0
        %v831 = vsel %vm826, %v384, 0
        %v834 = vsel %vm826, %v391, 0
        %v837 = vsel %vm826, %v398, 0
        %v840 = vsel %vm826, %v405, 0
        %v843 = vsel %vm826, %v412, 0
        %v846 = vsel %vm826, %v419, 0
        %v849 = vsel %vm826, %v426, 0
        %851 = vmatprep.subr.bf16.mxu0 0
        %852 = vmatpush1.bf16.msra.mxu0 %v735
        %853 = vmatprep.subr.bf16.mxu0 0
        %854 = vmatpush1.bf16.msra.mxu0 %v734
        %855 = vmatprep.subr.bf16.mxu0 0
        %856 = vmatpush1.bf16.msra.mxu0 %v733
        %857 = vmatprep.subr.bf16.mxu0 0
        %858 = vmatpush1.bf16.msra.mxu0 %v732
        %859 = vmatprep.subr.bf16.mxu0 0
        %860 = vmatpush1.bf16.msra.mxu0 %v731
        %861 = vmatprep.subr.bf16.mxu0 0
        %862 = vmatpush1.bf16.msra.mxu0 %v730
        %863 = vmatprep.subr.bf16.mxu0 0
        %864 = vmatpush1.bf16.msra.mxu0 %v729
        %865 = vmatprep.subr.bf16.mxu0 0
        %866 = vmatpush1.bf16.msra.mxu0 %v728
        %867 = vmatprep.subr.bf16.mxu0 0
        %868 = vmatpush2.bf16.msra.mxu0 %v743
        %869 = vmatprep.subr.bf16.mxu0 0
        %870 = vmatpush2.bf16.msra.mxu0 %v742
        %871 = vmatprep.subr.bf16.mxu0 0
        %872 = vmatpush2.bf16.msra.mxu0 %v741
        %873 = vmatprep.subr.bf16.mxu0 0
        %874 = vmatpush2.bf16.msra.mxu0 %v740
        %875 = vmatprep.subr.bf16.mxu0 0
        %876 = vmatpush2.bf16.msra.mxu0 %v739
        %877 = vmatprep.subr.bf16.mxu0 0
        %878 = vmatpush2.bf16.msra.mxu0 %v738
        %879 = vmatprep.subr.bf16.mxu0 0
        %880 = vmatpush2.bf16.msra.mxu0 %v737
        %881 = vmatprep.subr.bf16.mxu0 0
        %882 = vmatpush2.bf16.msra.mxu0 %v736
        %883 = vmatprep.mubr.bf16.mxu0 %v372
        %884 = vmatmul.mubr.bf16.gmra.mxu0 %v371
        %v885 = vpop.f32.mrf.mxu0
        %v886 = vadd.f32 %v530, %v885
        %v887 = vpop.f32.mrf.mxu0
        %v888 = vpop.f32.mrf.mxu0
        %v889 = vadd.f32 %v530, %v888
        %v890 = vpop.f32.mrf.mxu0
        %891 = vmatprep.mubr.bf16.mxu0 %v379
        %892 = vmatmul.mubr.bf16.gmra.mxu0 %v378
        %v893 = vpop.f32.mrf.mxu0
        %v894 = vadd.f32 %v530, %v893
        %v895 = vpop.f32.mrf.mxu0
        %v896 = vpop.f32.mrf.mxu0
        %v897 = vadd.f32 %v530, %v896
        %v898 = vpop.f32.mrf.mxu0
        %899 = vmatprep.mubr.bf16.mxu0 %v386
        %900 = vmatmul.mubr.bf16.gmra.mxu0 %v385
        %v901 = vpop.f32.mrf.mxu0
        %v902 = vadd.f32 %v530, %v901
        %v903 = vpop.f32.mrf.mxu0
        %v904 = vpop.f32.mrf.mxu0
        %v905 = vadd.f32 %v530, %v904
        %v906 = vpop.f32.mrf.mxu0
        %907 = vmatprep.mubr.bf16.mxu0 %v393
        %908 = vmatmul.mubr.bf16.gmra.mxu0 %v392
        %v909 = vpop.f32.mrf.mxu0
        %v910 = vadd.f32 %v530, %v909
        %v911 = vpop.f32.mrf.mxu0
        %v912 = vpop.f32.mrf.mxu0
        %v913 = vadd.f32 %v530, %v912
        %v914 = vpop.f32.mrf.mxu0
        %915 = vmatprep.mubr.bf16.mxu0 %v400
        %916 = vmatmul.mubr.bf16.gmra.mxu0 %v399
        %v917 = vpop.f32.mrf.mxu0
        %v918 = vadd.f32 %v530, %v917
        %v919 = vpop.f32.mrf.mxu0
        %v920 = vpop.f32.mrf.mxu0
        %v921 = vadd.f32 %v530, %v920
        %v922 = vpop.f32.mrf.mxu0
        %923 = vmatprep.mubr.bf16.mxu0 %v407
        %924 = vmatmul.mubr.bf16.gmra.mxu0 %v406
        %v925 = vpop.f32.mrf.mxu0
        %v926 = vadd.f32 %v530, %v925
        %v927 = vpop.f32.mrf.mxu0
        %v928 = vpop.f32.mrf.mxu0
        %v929 = vadd.f32 %v530, %v928
        %v930 = vpop.f32.mrf.mxu0
        %931 = vmatprep.mubr.bf16.mxu0 %v414
        %932 = vmatmul.mubr.bf16.gmra.mxu0 %v413
        %v933 = vpop.f32.mrf.mxu0
        %v934 = vadd.f32 %v530, %v933
        %v935 = vpop.f32.mrf.mxu0
        %v936 = vpop.f32.mrf.mxu0
        %v937 = vadd.f32 %v530, %v936
        %v938 = vpop.f32.mrf.mxu0
        %939 = vmatprep.mubr.bf16.mxu0 %v421
        %940 = vmatmul.mubr.bf16.gmra.mxu0 %v420
        %v941 = vpop.f32.mrf.mxu0
        %v942 = vadd.f32 %v530, %v941
        %v943 = vpop.f32.mrf.mxu0
        %v944 = vpop.f32.mrf.mxu0
        %v945 = vadd.f32 %v530, %v944
        %v946 = vpop.f32.mrf.mxu0
        %947 = vdwg.mxu0
        %948 = vmatprep.subr.bf16.mxu0 0
        %949 = vmatpush1.bf16.msra.mxu0 %v751
        %950 = vmatprep.subr.bf16.mxu0 0
        %951 = vmatpush1.bf16.msra.mxu0 %v750
        %952 = vmatprep.subr.bf16.mxu0 0
        %953 = vmatpush1.bf16.msra.mxu0 %v749
        %954 = vmatprep.subr.bf16.mxu0 0
        %955 = vmatpush1.bf16.msra.mxu0 %v748
        %956 = vmatprep.subr.bf16.mxu0 0
        %957 = vmatpush1.bf16.msra.mxu0 %v747
        %958 = vmatprep.subr.bf16.mxu0 0
        %959 = vmatpush1.bf16.msra.mxu0 %v746
        %960 = vmatprep.subr.bf16.mxu0 0
        %961 = vmatpush1.bf16.msra.mxu0 %v745
        %962 = vmatprep.subr.bf16.mxu0 0
        %963 = vmatpush1.bf16.msra.mxu0 %v744
        %964 = vmatprep.subr.bf16.mxu0 0
        %965 = vmatpush2.bf16.msra.mxu0 %v759
        %966 = vmatprep.subr.bf16.mxu0 0
        %967 = vmatpush2.bf16.msra.mxu0 %v758
        %968 = vmatprep.subr.bf16.mxu0 0
        %969 = vmatpush2.bf16.msra.mxu0 %v757
        %970 = vmatprep.subr.bf16.mxu0 0
        %971 = vmatpush2.bf16.msra.mxu0 %v756
        %972 = vmatprep.subr.bf16.mxu0 0
        %973 = vmatpush2.bf16.msra.mxu0 %v755
        %974 = vmatprep.subr.bf16.mxu0 0
        %975 = vmatpush2.bf16.msra.mxu0 %v754
        %976 = vmatprep.subr.bf16.mxu0 0
        %977 = vmatpush2.bf16.msra.mxu0 %v753
        %978 = vmatprep.subr.bf16.mxu0 0
        %979 = vmatpush2.bf16.msra.mxu0 %v752
        %980 = vmatprep.mubr.bf16.mxu0 %v374
        %981 = vmatmul.mubr.bf16.gmra.mxu0 %v373
        %v982 = vpop.f32.mrf.mxu0
        %v983 = vadd.f32 %v886, %v982
        %v984 = vpop.f32.mrf.mxu0
        %v985 = vpop.f32.mrf.mxu0
        %v986 = vadd.f32 %v889, %v985
        %v987 = vpop.f32.mrf.mxu0
        %988 = vmatprep.mubr.bf16.mxu0 %v381
        %989 = vmatmul.mubr.bf16.gmra.mxu0 %v380
        %v990 = vpop.f32.mrf.mxu0
        %v991 = vadd.f32 %v894, %v990
        %v992 = vpop.f32.mrf.mxu0
        %v993 = vpop.f32.mrf.mxu0
        %v994 = vadd.f32 %v897, %v993
        %v995 = vpop.f32.mrf.mxu0
        %996 = vmatprep.mubr.bf16.mxu0 %v388
        %997 = vmatmul.mubr.bf16.gmra.mxu0 %v387
        %v998 = vpop.f32.mrf.mxu0
        %v999 = vadd.f32 %v902, %v998
        %v1000 = vpop.f32.mrf.mxu0
        %v1001 = vpop.f32.mrf.mxu0
        %v1002 = vadd.f32 %v905, %v1001
        %v1003 = vpop.f32.mrf.mxu0
        %1004 = vmatprep.mubr.bf16.mxu0 %v395
        %1005 = vmatmul.mubr.bf16.gmra.mxu0 %v394
        %v1006 = vpop.f32.mrf.mxu0
        %v1007 = vadd.f32 %v910, %v1006
        %v1008 = vpop.f32.mrf.mxu0
        %v1009 = vpop.f32.mrf.mxu0
        %v1010 = vadd.f32 %v913, %v1009
        %v1011 = vpop.f32.mrf.mxu0
        %1012 = vmatprep.mubr.bf16.mxu0 %v402
        %1013 = vmatmul.mubr.bf16.gmra.mxu0 %v401
        %v1014 = vpop.f32.mrf.mxu0
        %v1015 = vadd.f32 %v918, %v1014
        %v1016 = vpop.f32.mrf.mxu0
        %v1017 = vpop.f32.mrf.mxu0
        %v1018 = vadd.f32 %v921, %v1017
        %v1019 = vpop.f32.mrf.mxu0
        %1020 = vmatprep.mubr.bf16.mxu0 %v409
        %1021 = vmatmul.mubr.bf16.gmra.mxu0 %v408
        %v1022 = vpop.f32.mrf.mxu0
        %v1023 = vadd.f32 %v926, %v1022
        %v1024 = vpop.f32.mrf.mxu0
        %v1025 = vpop.f32.mrf.mxu0
        %v1026 = vadd.f32 %v929, %v1025
        %v1027 = vpop.f32.mrf.mxu0
        %1028 = vmatprep.mubr.bf16.mxu0 %v416
        %1029 = vmatmul.mubr.bf16.gmra.mxu0 %v415
        %v1030 = vpop.f32.mrf.mxu0
        %v1031 = vadd.f32 %v934, %v1030
        %v1032 = vpop.f32.mrf.mxu0
        %v1033 = vpop.f32.mrf.mxu0
        %v1034 = vadd.f32 %v937, %v1033
        %v1035 = vpop.f32.mrf.mxu0
        %1036 = vmatprep.mubr.bf16.mxu0 %v423
        %1037 = vmatmul.mubr.bf16.gmra.mxu0 %v422
        %v1038 = vpop.f32.mrf.mxu0
        %v1039 = vadd.f32 %v942, %v1038
        %v1040 = vpop.f32.mrf.mxu0
        %v1041 = vpop.f32.mrf.mxu0
        %v1042 = vadd.f32 %v945, %v1041
        %v1043 = vpop.f32.mrf.mxu0
        %1044 = vdwg.mxu0
        %1045 = vmatprep.subr.bf16.mxu0 0
        %1046 = vmatpush1.bf16.msra.mxu0 %v767
        %1047 = vmatprep.subr.bf16.mxu0 0
        %1048 = vmatpush1.bf16.msra.mxu0 %v766
        %1049 = vmatprep.subr.bf16.mxu0 0
        %1050 = vmatpush1.bf16.msra.mxu0 %v765
        %1051 = vmatprep.subr.bf16.mxu0 0
        %1052 = vmatpush1.bf16.msra.mxu0 %v764
        %1053 = vmatprep.subr.bf16.mxu0 0
        %1054 = vmatpush1.bf16.msra.mxu0 %v763
        %1055 = vmatprep.subr.bf16.mxu0 0
        %1056 = vmatpush1.bf16.msra.mxu0 %v762
        %1057 = vmatprep.subr.bf16.mxu0 0
        %1058 = vmatpush1.bf16.msra.mxu0 %v761
        %1059 = vmatprep.subr.bf16.mxu0 0
        %1060 = vmatpush1.bf16.msra.mxu0 %v760
        %1061 = vmatprep.subr.bf16.mxu0 0
        %1062 = vmatpush2.bf16.msra.mxu0 %v775
        %1063 = vmatprep.subr.bf16.mxu0 0
        %1064 = vmatpush2.bf16.msra.mxu0 %v774
        %1065 = vmatprep.subr.bf16.mxu0 0
        %1066 = vmatpush2.bf16.msra.mxu0 %v773
        %1067 = vmatprep.subr.bf16.mxu0 0
        %1068 = vmatpush2.bf16.msra.mxu0 %v772
        %1069 = vmatprep.subr.bf16.mxu0 0
        %1070 = vmatpush2.bf16.msra.mxu0 %v771
        %1071 = vmatprep.subr.bf16.mxu0 0
        %1072 = vmatpush2.bf16.msra.mxu0 %v770
        %1073 = vmatprep.subr.bf16.mxu0 0
        %1074 = vmatpush2.bf16.msra.mxu0 %v769
        %1075 = vmatprep.subr.bf16.mxu0 0
        %1076 = vmatpush2.bf16.msra.mxu0 %v768
        %1077 = vmatprep.mubr.bf16.mxu0 %v376
        %1078 = vmatmul.mubr.bf16.gmra.mxu0 %v375
        %v1079 = vpop.f32.mrf.mxu0
        %v1080 = vadd.f32 %v983, %v1079
        %v1081 = vpop.f32.mrf.mxu0
        %v1082 = vpop.f32.mrf.mxu0
        %v1083 = vadd.f32 %v986, %v1082
        %v1084 = vpop.f32.mrf.mxu0
        %1085 = vmatprep.mubr.bf16.mxu0 %v383
        %1086 = vmatmul.mubr.bf16.gmra.mxu0 %v382
        %v1087 = vpop.f32.mrf.mxu0
        %v1088 = vadd.f32 %v991, %v1087
        %v1089 = vpop.f32.mrf.mxu0
        %v1090 = vpop.f32.mrf.mxu0
        %v1091 = vadd.f32 %v994, %v1090
        %v1092 = vpop.f32.mrf.mxu0
        %1093 = vmatprep.mubr.bf16.mxu0 %v390
        %1094 = vmatmul.mubr.bf16.gmra.mxu0 %v389
        %v1095 = vpop.f32.mrf.mxu0
        %v1096 = vadd.f32 %v999, %v1095
        %v1097 = vpop.f32.mrf.mxu0
        %v1098 = vpop.f32.mrf.mxu0
        %v1099 = vadd.f32 %v1002, %v1098
        %v1100 = vpop.f32.mrf.mxu0
        %1101 = vmatprep.mubr.bf16.mxu0 %v397
        %1102 = vmatmul.mubr.bf16.gmra.mxu0 %v396
        %v1103 = vpop.f32.mrf.mxu0
        %v1104 = vadd.f32 %v1007, %v1103
        %v1105 = vpop.f32.mrf.mxu0
        %v1106 = vpop.f32.mrf.mxu0
        %v1107 = vadd.f32 %v1010, %v1106
        %v1108 = vpop.f32.mrf.mxu0
        %1109 = vmatprep.mubr.bf16.mxu0 %v404
        %1110 = vmatmul.mubr.bf16.gmra.mxu0 %v403
        %v1111 = vpop.f32.mrf.mxu0
        %v1112 = vadd.f32 %v1015, %v1111
        %v1113 = vpop.f32.mrf.mxu0
        %v1114 = vpop.f32.mrf.mxu0
        %v1115 = vadd.f32 %v1018, %v1114
        %v1116 = vpop.f32.mrf.mxu0
        %1117 = vmatprep.mubr.bf16.mxu0 %v411
        %1118 = vmatmul.mubr.bf16.gmra.mxu0 %v410
        %v1119 = vpop.f32.mrf.mxu0
        %v1120 = vadd.f32 %v1023, %v1119
        %v1121 = vpop.f32.mrf.mxu0
        %v1122 = vpop.f32.mrf.mxu0
        %v1123 = vadd.f32 %v1026, %v1122
        %v1124 = vpop.f32.mrf.mxu0
        %1125 = vmatprep.mubr.bf16.mxu0 %v418
        %1126 = vmatmul.mubr.bf16.gmra.mxu0 %v417
        %v1127 = vpop.f32.mrf.mxu0
        %v1128 = vadd.f32 %v1031, %v1127
        %v1129 = vpop.f32.mrf.mxu0
        %v1130 = vpop.f32.mrf.mxu0
        %v1131 = vadd.f32 %v1034, %v1130
        %v1132 = vpop.f32.mrf.mxu0
        %1133 = vmatprep.mubr.bf16.mxu0 %v425
        %1134 = vmatmul.mubr.bf16.gmra.mxu0 %v424
        %v1135 = vpop.f32.mrf.mxu0
        %v1136 = vadd.f32 %v1039, %v1135
        %v1137 = vpop.f32.mrf.mxu0
        %v1138 = vpop.f32.mrf.mxu0
        %v1139 = vadd.f32 %v1042, %v1138
        %v1140 = vpop.f32.mrf.mxu0
        %1141 = vdwg.mxu0
        %1142 = vmatprep.subr.bf16.mxu0 0
        %1143 = vmatpush1.bf16.msra.mxu0 0
        %1144 = vmatprep.subr.bf16.mxu0 0
        %1145 = vmatpush1.bf16.msra.mxu0 0
        %1146 = vmatprep.subr.bf16.mxu0 0
        %1147 = vmatpush1.bf16.msra.mxu0 0
        %1148 = vmatprep.subr.bf16.mxu0 0
        %1149 = vmatpush1.bf16.msra.mxu0 0
        %1150 = vmatprep.subr.bf16.mxu0 0
        %1151 = vmatpush1.bf16.msra.mxu0 0
        %1152 = vmatprep.subr.bf16.mxu0 0
        %1153 = vmatpush1.bf16.msra.mxu0 0
        %1154 = vmatprep.subr.bf16.mxu0 0
        %1155 = vmatpush1.bf16.msra.mxu0 0
        %1156 = vmatprep.subr.bf16.mxu0 0
        %1157 = vmatpush1.bf16.msra.mxu0 %v776
        %1158 = vmatprep.subr.bf16.mxu0 0
        %1159 = vmatpush2.bf16.msra.mxu0 0
        %1160 = vmatprep.subr.bf16.mxu0 0
        %1161 = vmatpush2.bf16.msra.mxu0 0
        %1162 = vmatprep.subr.bf16.mxu0 0
        %1163 = vmatpush2.bf16.msra.mxu0 0
        %1164 = vmatprep.subr.bf16.mxu0 0
        %1165 = vmatpush2.bf16.msra.mxu0 0
        %1166 = vmatprep.subr.bf16.mxu0 0
        %1167 = vmatpush2.bf16.msra.mxu0 0
        %1168 = vmatprep.subr.bf16.mxu0 0
        %1169 = vmatpush2.bf16.msra.mxu0 0
        %1170 = vmatprep.subr.bf16.mxu0 0
        %1171 = vmatpush2.bf16.msra.mxu0 0
        %1172 = vmatprep.subr.bf16.mxu0 0
        %1173 = vmatpush2.bf16.msra.mxu0 0
        %1174 = vmatprep.mubr.bf16.mxu0 0
        %1175 = vmatmul.mubr.bf16.gmra.mxu0 %v828
        %v1176 = vpop.f32.mrf.mxu0
        %v1177 = vadd.f32 %v1080, %v1176
        %v1178 = vpop.f32.mrf.mxu0
        %v1179 = vpop.f32.mrf.mxu0
        %v1180 = vadd.f32 %v1083, %v1179
        %v1181 = vpop.f32.mrf.mxu0
        %1182 = vmatprep.mubr.bf16.mxu0 0
        %1183 = vmatmul.mubr.bf16.gmra.mxu0 %v831
        %v1184 = vpop.f32.mrf.mxu0
        %v1185 = vadd.f32 %v1088, %v1184
        %v1186 = vpop.f32.mrf.mxu0
        %v1187 = vpop.f32.mrf.mxu0
        %v1188 = vadd.f32 %v1091, %v1187
        %v1189 = vpop.f32.mrf.mxu0
        %1190 = vmatprep.mubr.bf16.mxu0 0
        %1191 = vmatmul.mubr.bf16.gmra.mxu0 %v834
        %v1192 = vpop.f32.mrf.mxu0
        %v1193 = vadd.f32 %v1096, %v1192
        %v1194 = vpop.f32.mrf.mxu0
        %v1195 = vpop.f32.mrf.mxu0
        %v1196 = vadd.f32 %v1099, %v1195
        %v1197 = vpop.f32.mrf.mxu0
        %1198 = vmatprep.mubr.bf16.mxu0 0
        %1199 = vmatmul.mubr.bf16.gmra.mxu0 %v837
        %v1200 = vpop.f32.mrf.mxu0
        %v1201 = vadd.f32 %v1104, %v1200
        %v1202 = vpop.f32.mrf.mxu0
        %v1203 = vpop.f32.mrf.mxu0
        %v1204 = vadd.f32 %v1107, %v1203
        %v1205 = vpop.f32.mrf.mxu0
        %1206 = vmatprep.mubr.bf16.mxu0 0
        %1207 = vmatmul.mubr.bf16.gmra.mxu0 %v840
        %v1208 = vpop.f32.mrf.mxu0
        %v1209 = vadd.f32 %v1112, %v1208
        %v1210 = vpop.f32.mrf.mxu0
        %v1211 = vpop.f32.mrf.mxu0
        %v1212 = vadd.f32 %v1115, %v1211
        %v1213 = vpop.f32.mrf.mxu0
        %1214 = vmatprep.mubr.bf16.mxu0 0
        %1215 = vmatmul.mubr.bf16.gmra.mxu0 %v843
        %v1216 = vpop.f32.mrf.mxu0
        %v1217 = vadd.f32 %v1120, %v1216
        %v1218 = vpop.f32.mrf.mxu0
        %v1219 = vpop.f32.mrf.mxu0
        %v1220 = vadd.f32 %v1123, %v1219
        %v1221 = vpop.f32.mrf.mxu0
        %1222 = vmatprep.mubr.bf16.mxu0 0
        %1223 = vmatmul.mubr.bf16.gmra.mxu0 %v846
        %v1224 = vpop.f32.mrf.mxu0
        %v1225 = vadd.f32 %v1128, %v1224
        %v1226 = vpop.f32.mrf.mxu0
        %v1227 = vpop.f32.mrf.mxu0
        %v1228 = vadd.f32 %v1131, %v1227
        %v1229 = vpop.f32.mrf.mxu0
        %1230 = vmatprep.mubr.bf16.mxu0 0
        %1231 = vmatmul.mubr.bf16.gmra.mxu0 %v849
        %v1232 = vpop.f32.mrf.mxu0
        %v1233 = vadd.f32 %v1136, %v1232
        %v1234 = vpop.f32.mrf.mxu0
        %v1235 = vpop.f32.mrf.mxu0
        %v1236 = vadd.f32 %v1139, %v1235
        %v1237 = vpop.f32.mrf.mxu0
        %1238 = vdwg.mxu0
        %v1239 = vmax.f32 %v1177, 0.0
        %v1240 = vmax.f32 %v1180, 0.0
        %v1241 = vmax.f32 %v1185, 0.0
        %v1242 = vmax.f32 %v1188, 0.0
        %v1243 = vmax.f32 %v1193, 0.0
        %v1244 = vmax.f32 %v1196, 0.0
        %v1245 = vmax.f32 %v1201, 0.0
        %v1246 = vmax.f32 %v1204, 0.0
        %v1247 = vmax.f32 %v1209, 0.0
        %v1248 = vmax.f32 %v1212, 0.0
        %v1249 = vmax.f32 %v1217, 0.0
        %v1250 = vmax.f32 %v1220, 0.0
        %v1251 = vmax.f32 %v1225, 0.0
        %v1252 = vmax.f32 %v1228, 0.0
        %v1253 = vmax.f32 %v1233, 0.0
        %v1254 = vmax.f32 %v1236, 0.0
        %v1255 = vpack.c.bf16 %v1240, %v1239
        %v1256 = vpack.c.bf16 %v1242, %v1241
        %v1257 = vpack.c.bf16 %v1244, %v1243
        %v1258 = vpack.c.bf16 %v1246, %v1245
        %v1259 = vpack.c.bf16 %v1248, %v1247
        %v1260 = vpack.c.bf16 %v1250, %v1249
        %v1261 = vpack.c.bf16 %v1252, %v1251
        %v1262 = vpack.c.bf16 %v1254, %v1253
        %v1263 = vld [vmem:[%s3] sm:$0xf]
        %v1264 = vld [vmem:[%s3 + $0x4] sm:$0xf]
        %v1265 = vld [vmem:[%s3 + $0x8] sm:$0xf]
        %v1266 = vld [vmem:[%s3 + $0xc] sm:$0xf]
        %v1267 = vld [vmem:[%s3 + $0x10] sm:$0xf]
        %v1268 = vld [vmem:[%s3 + $0x14] sm:$0xf]
        %v1269 = vld [vmem:[%s3 + $0x18] sm:$0xf]
        %v1270 = vld [vmem:[%s3 + $0x1c] sm:$0xf]
        %v1271 = vld [vmem:[%s3 + $0x20] sm:$0xf]
        %v1272 = vld [vmem:[%s3 + $0x24] sm:$0xf]
        %v1273 = vld [vmem:[%s3 + $0x28] sm:$0xf]
        %v1274 = vld [vmem:[%s3 + $0x2c] sm:$0xf]
        %v1275 = vld [vmem:[%s3 + $0x30] sm:$0xf]
        %v1276 = vld [vmem:[%s3 + $0x34] sm:$0xf]
        %v1277 = vld [vmem:[%s3 + $0x38] sm:$0xf]
        %v1278 = vld [vmem:[%s3 + $0x3c] sm:$0xf]
        %v1279 = vld [vmem:[%s4] sm:$0x1]
        %v1281 = vlaneseq
        %v1282 = vshrl.u32 %v1281, 7
        %v1283 = vsub.s32 0, %v1282
        %v1284 = vrot.slane %v1279, %v1283
        %v1302 = vunpack.c.l.b16 %v1263
        %v1303 = vunpack.c.l.b16 %v1264
        %v1304 = vunpack.c.l.b16 %v1265
        %v1305 = vunpack.c.l.b16 %v1266
        %v1306 = vunpack.c.l.b16 %v1267
        %v1307 = vunpack.c.l.b16 %v1268
        %v1308 = vunpack.c.l.b16 %v1269
        %v1309 = vunpack.c.l.b16 %v1270
        %v1310 = vunpack.c.l.b16 %v1271
        %v1311 = vunpack.c.l.b16 %v1272
        %v1312 = vunpack.c.l.b16 %v1273
        %v1313 = vunpack.c.l.b16 %v1274
        %v1314 = vunpack.c.l.b16 %v1275
        %v1315 = vunpack.c.l.b16 %v1276
        %v1316 = vunpack.c.l.b16 %v1277
        %v1317 = vunpack.c.l.b16 %v1278
        %v1318 = vpack.c.b16 %v1303, %v1302
        %v1319 = vpack.c.b16 %v1305, %v1304
        %v1320 = vpack.c.b16 %v1307, %v1306
        %v1321 = vpack.c.b16 %v1309, %v1308
        %v1322 = vpack.c.b16 %v1311, %v1310
        %v1323 = vpack.c.b16 %v1313, %v1312
        %v1324 = vpack.c.b16 %v1315, %v1314
        %v1325 = vpack.c.b16 %v1317, %v1316
        %1334 = vmatprep.subr.bf16.mxu0 0
        %1335 = vmatpush1.bf16.msra.mxu0 %v1325
        %1336 = vmatprep.subr.bf16.mxu0 0
        %1337 = vmatpush1.bf16.msra.mxu0 %v1324
        %1338 = vmatprep.subr.bf16.mxu0 0
        %1339 = vmatpush1.bf16.msra.mxu0 %v1323
        %1340 = vmatprep.subr.bf16.mxu0 0
        %1341 = vmatpush1.bf16.msra.mxu0 %v1322
        %1342 = vmatprep.subr.bf16.mxu0 0
        %1343 = vmatpush1.bf16.msra.mxu0 %v1321
        %1344 = vmatprep.subr.bf16.mxu0 0
        %1345 = vmatpush1.bf16.msra.mxu0 %v1320
        %1346 = vmatprep.subr.bf16.mxu0 0
        %1347 = vmatpush1.bf16.msra.mxu0 %v1319
        %1348 = vmatprep.subr.bf16.mxu0 0
        %1349 = vmatpush1.bf16.msra.mxu0 %v1318
        %1350 = vmatprep.subr.bf16.mxu0 0
        %1351 = vmatpush2.bf16.msra.mxu0 0
        %1352 = vmatprep.subr.bf16.mxu0 0
        %1353 = vmatpush2.bf16.msra.mxu0 0
        %1354 = vmatprep.subr.bf16.mxu0 0
        %1355 = vmatpush2.bf16.msra.mxu0 0
        %1356 = vmatprep.subr.bf16.mxu0 0
        %1357 = vmatpush2.bf16.msra.mxu0 0
        %1358 = vmatprep.subr.bf16.mxu0 0
        %1359 = vmatpush2.bf16.msra.mxu0 0
        %1360 = vmatprep.subr.bf16.mxu0 0
        %1361 = vmatpush2.bf16.msra.mxu0 0
        %1362 = vmatprep.subr.bf16.mxu0 0
        %1363 = vmatpush2.bf16.msra.mxu0 0
        %1364 = vmatprep.subr.bf16.mxu0 0
        %1365 = vmatpush2.bf16.msra.mxu0 0
        %1366 = vmatprep.mubr.bf16.mxu0 0
        %1367 = vmatmul.mubr.bf16.gmra.mxu0 %v1255
        %v1368 = vpop.f32.mrf.mxu0
        %v1369 = vadd.f32 %v1284, %v1368
        %v1370 = vpop.f32.mrf.mxu0
        %v1371 = vpop.f32.mrf.mxu0
        %v1372 = vadd.f32 %v1284, %v1371
        %v1373 = vpop.f32.mrf.mxu0
        %1374 = vmatprep.mubr.bf16.mxu0 0
        %1375 = vmatmul.mubr.bf16.gmra.mxu0 %v1256
        %v1376 = vpop.f32.mrf.mxu0
        %v1377 = vadd.f32 %v1284, %v1376
        %v1378 = vpop.f32.mrf.mxu0
        %v1379 = vpop.f32.mrf.mxu0
        %v1380 = vadd.f32 %v1284, %v1379
        %v1381 = vpop.f32.mrf.mxu0
        %1382 = vmatprep.mubr.bf16.mxu0 0
        %1383 = vmatmul.mubr.bf16.gmra.mxu0 %v1257
        %v1384 = vpop.f32.mrf.mxu0
        %v1385 = vadd.f32 %v1284, %v1384
        %v1386 = vpop.f32.mrf.mxu0
        %v1387 = vpop.f32.mrf.mxu0
        %v1388 = vadd.f32 %v1284, %v1387
        %v1389 = vpop.f32.mrf.mxu0
        %1390 = vmatprep.mubr.bf16.mxu0 0
        %1391 = vmatmul.mubr.bf16.gmra.mxu0 %v1258
        %v1392 = vpop.f32.mrf.mxu0
        %v1393 = vadd.f32 %v1284, %v1392
        %v1394 = vpop.f32.mrf.mxu0
        %v1395 = vpop.f32.mrf.mxu0
        %v1396 = vadd.f32 %v1284, %v1395
        %v1397 = vpop.f32.mrf.mxu0
        %1398 = vmatprep.mubr.bf16.mxu0 0
        %1399 = vmatmul.mubr.bf16.gmra.mxu0 %v1259
        %v1400 = vpop.f32.mrf.mxu0
        %v1401 = vadd.f32 %v1284, %v1400
        %v1402 = vpop.f32.mrf.mxu0
        %v1403 = vpop.f32.mrf.mxu0
        %v1404 = vadd.f32 %v1284, %v1403
        %v1405 = vpop.f32.mrf.mxu0
        %1406 = vmatprep.mubr.bf16.mxu0 0
        %1407 = vmatmul.mubr.bf16.gmra.mxu0 %v1260
        %v1408 = vpop.f32.mrf.mxu0
        %v1409 = vadd.f32 %v1284, %v1408
        %v1410 = vpop.f32.mrf.mxu0
        %v1411 = vpop.f32.mrf.mxu0
        %v1412 = vadd.f32 %v1284, %v1411
        %v1413 = vpop.f32.mrf.mxu0
        %1414 = vmatprep.mubr.bf16.mxu0 0
        %1415 = vmatmul.mubr.bf16.gmra.mxu0 %v1261
        %v1416 = vpop.f32.mrf.mxu0
        %v1417 = vadd.f32 %v1284, %v1416
        %v1418 = vpop.f32.mrf.mxu0
        %v1419 = vpop.f32.mrf.mxu0
        %v1420 = vadd.f32 %v1284, %v1419
        %v1421 = vpop.f32.mrf.mxu0
        %1422 = vmatprep.mubr.bf16.mxu0 0
        %1423 = vmatmul.mubr.bf16.gmra.mxu0 %v1262
        %v1424 = vpop.f32.mrf.mxu0
        %v1425 = vadd.f32 %v1284, %v1424
        %v1426 = vpop.f32.mrf.mxu0
        %v1427 = vpop.f32.mrf.mxu0
        %v1428 = vadd.f32 %v1284, %v1427
        %v1429 = vpop.f32.mrf.mxu0
        %1430 = vdwg.mxu0
        %vm1431 = vcmask 80896
        %1432 = vst.msk [vmem:[%s246] sm:$0xff] %vm1431, %v1369
        %1433 = vst.msk [vmem:[%s246 + $0x8] sm:$0xff] %vm1431, %v1372
        %1434 = vst.msk [vmem:[%s246 + $0x10] sm:$0xff] %vm1431, %v1377
        %1435 = vst.msk [vmem:[%s246 + $0x18] sm:$0xff] %vm1431, %v1380
        %1436 = vst.msk [vmem:[%s246 + $0x20] sm:$0xff] %vm1431, %v1385
        %1437 = vst.msk [vmem:[%s246 + $0x28] sm:$0xff] %vm1431, %v1388
        %1438 = vst.msk [vmem:[%s246 + $0x30] sm:$0xff] %vm1431, %v1393
        %1439 = vst.msk [vmem:[%s246 + $0x38] sm:$0xff] %vm1431, %v1396
        %1440 = vst.msk [vmem:[%s246 + $0x40] sm:$0xff] %vm1431, %v1401
        %1441 = vst.msk [vmem:[%s246 + $0x48] sm:$0xff] %vm1431, %v1404
        %1442 = vst.msk [vmem:[%s246 + $0x50] sm:$0xff] %vm1431, %v1409
        %1443 = vst.msk [vmem:[%s246 + $0x58] sm:$0xff] %vm1431, %v1412
        %1444 = vst.msk [vmem:[%s246 + $0x60] sm:$0xff] %vm1431, %v1417
        %1445 = vst.msk [vmem:[%s246 + $0x68] sm:$0xff] %vm1431, %v1420
        %1446 = vst.msk [vmem:[%s246 + $0x70] sm:$0xff] %vm1431, %v1425
        %1447 = vst.msk [vmem:[%s246 + $0x78] sm:$0xff] %vm1431, %v1428
        %s1448 = sand.u32 %s137, 1
        %s1449 = sand.u32 %s137, 1
        %s1450 = smul.addr %s1449, 128
        %s1451 = scalar_lea.vmem [#allocation4], %s1450
        // Predicated region
        $region45: #{mlp_forward.1} parent=39 // pred_check
          %p1452 = pneg %p147
        $region46: #{mlp_forward.1} parent=39 // pred_check_branch
          %1454 = sbr.rel (%p1452) target = $region48
        $region47: #{mlp_forward.1} parent=39 // pred_region
          %s1455 = smul.u32 16, %s19
          %s1456 = ssub.s32 25, %s1455
          %p1457 = scmp.lt.s32.totalorder %s1456, 16
          %s1458 = scalar_select %p1457, %s1456, 16
          %s1459 = smul.u32 128, %s1458
          %p1460 = scmp.ne.s32.totalorder 0, %s1459
          %s1461 = smul.addr %s1455, 8
          %s1462 = scalar_lea.vmem %s5, %s1461
          // Predicated region
          $region49: #{mlp_forward.1} parent=47 // pred_check
            %p1463 = pneg %p1460
          $region50: #{mlp_forward.1} parent=47 // pred_check_branch
            %1465 = sbr.rel (%p1463) target = $region52
          $region51: #{mlp_forward.1} parent=47 // pred_region
            // Predicated region
            $region53: #{mlp_forward.1} parent=51 // pred_check
              _
            $region54: #{mlp_forward.1} parent=51 // pred_check_branch
              %1467 = sbr.rel (0) target = $region56
            $region55: #{mlp_forward.1} parent=51 // pred_region
              // Predicated region
              $region75: #{mlp_forward.1} parent=55 // pred_check
                _
              $region76: #{mlp_forward.1} parent=55 // pred_check_branch
                %1547 = sbr.rel (0) target = $region78
              $region77: #{mlp_forward.1} parent=55 // pred_region
                %s1548 = sshrl.u32 %s1458, 4
                // While loop
                $region79: #{mlp_forward.1} parent=77 // loop_pre_header
                  _
                $region80: #{mlp_forward.1} parent=77 // loop_header
                  %s1550 = sphi 0, %s1552
                  %p1551 = scmp.ge.s32.totalorder %s1550, %s1548
                  %s1555 = sphi 0, %s1592
                  %s1556 = sphi %s1451, %s1595
                  %s1557 = sphi %s1462, %s1596
                $region81: #{mlp_forward.1} parent=77 // loop_header_branch
                  %1554 = sbr.rel (%p1551) target = $region85
                $region82: #{mlp_forward.1} parent=77 // loop_body
                  %v1558 = vld [vmem:[%s1556] sm:$0xff]
                  %1559 = vst [vmem:[%s1557] sm:$0xff] %v1558
                  %v1560 = vld [vmem:[%s1556 + $0x8] sm:$0xff]
                  %1561 = vst [vmem:[%s1557 + $0x8] sm:$0xff] %v1560
                  %v1562 = vld [vmem:[%s1556 + $0x10] sm:$0xff]
                  %1563 = vst [vmem:[%s1557 + $0x10] sm:$0xff] %v1562
                  %v1564 = vld [vmem:[%s1556 + $0x18] sm:$0xff]
                  %1565 = vst [vmem:[%s1557 + $0x18] sm:$0xff] %v1564
                  %v1566 = vld [vmem:[%s1556 + $0x20] sm:$0xff]
                  %1567 = vst [vmem:[%s1557 + $0x20] sm:$0xff] %v1566
                  %v1568 = vld [vmem:[%s1556 + $0x28] sm:$0xff]
                  %1569 = vst [vmem:[%s1557 + $0x28] sm:$0xff] %v1568
                  %v1570 = vld [vmem:[%s1556 + $0x30] sm:$0xff]
                  %1571 = vst [vmem:[%s1557 + $0x30] sm:$0xff] %v1570
                  %v1572 = vld [vmem:[%s1556 + $0x38] sm:$0xff]
                  %1573 = vst [vmem:[%s1557 + $0x38] sm:$0xff] %v1572
                  %v1574 = vld [vmem:[%s1556 + $0x40] sm:$0xff]
                  %1575 = vst [vmem:[%s1557 + $0x40] sm:$0xff] %v1574
                  %v1576 = vld [vmem:[%s1556 + $0x48] sm:$0xff]
                  %1577 = vst [vmem:[%s1557 + $0x48] sm:$0xff] %v1576
                  %v1578 = vld [vmem:[%s1556 + $0x50] sm:$0xff]
                  %1579 = vst [vmem:[%s1557 + $0x50] sm:$0xff] %v1578
                  %v1580 = vld [vmem:[%s1556 + $0x58] sm:$0xff]
                  %1581 = vst [vmem:[%s1557 + $0x58] sm:$0xff] %v1580
                  %v1582 = vld [vmem:[%s1556 + $0x60] sm:$0xff]
                  %1583 = vst [vmem:[%s1557 + $0x60] sm:$0xff] %v1582
                  %v1584 = vld [vmem:[%s1556 + $0x68] sm:$0xff]
                  %1585 = vst [vmem:[%s1557 + $0x68] sm:$0xff] %v1584
                  %v1586 = vld [vmem:[%s1556 + $0x70] sm:$0xff]
                  %1587 = vst [vmem:[%s1557 + $0x70] sm:$0xff] %v1586
                  %v1588 = vld [vmem:[%s1556 + $0x78] sm:$0xff]
                  %1589 = vst [vmem:[%s1557 + $0x78] sm:$0xff] %v1588
                  %s1590 = sadd.s32 1, %s1555
                  %p1591 = scmp.ge.s32.totalorder %s1590, %s1548
                  %s1592 = scalar_select %p1591, 0, %s1590
                  %s1593 = smul.u32 %s1592, 128
                  %s1594 = smul.u32 %s1592, 128
                  %s1595 = scalar_lea.vmem %s1451, %s1593 [#allocation4]
                  %s1596 = scalar_lea.vmem %s1462, %s1594
                $region83: #{mlp_forward.1} parent=77 // loop_footer
                  %s1552 = sadd.s32 %s1550, 1
                $region84: #{mlp_forward.1} parent=77 // loop_footer_branch
                  %1549 = sbr.rel target = $region80
                $region85: #{mlp_forward.1} parent=77 // loop_exit
                  _
                %s1597 = sshrl.u32 %s1458, 4
                %s1598 = sand.u32 %s1458, 15
                %s1599 = smul.u32 %s1597, 16
                %s1600 = smul.u32 8, %s1599
                %s1601 = scalar_lea.vmem %s1451, %s1600 [#allocation4]
                %s1602 = smul.u32 8, %s1599
                %s1603 = scalar_lea.vmem %s1462, %s1602
                // While loop
                $region86: #{mlp_forward.1} parent=77 // loop_pre_header
                  _
                $region87: #{mlp_forward.1} parent=77 // loop_header
                  %s1605 = sphi 0, %s1607
                  %p1606 = scmp.ge.s32.totalorder %s1605, %s1598
                  %s1610 = sphi 0, %s1617
                  %s1611 = sphi %s1601, %s1620
                  %s1612 = sphi %s1603, %s1621
                $region88: #{mlp_forward.1} parent=77 // loop_header_branch
                  %1609 = sbr.rel (%p1606) target = $region92
                $region89: #{mlp_forward.1} parent=77 // loop_body
                  %v1613 = vld [vmem:[%s1611] sm:$0xff]
                  %1614 = vst [vmem:[%s1612] sm:$0xff] %v1613
                  %s1615 = sadd.s32 1, %s1610
                  %p1616 = scmp.ge.s32.totalorder %s1615, %s1598
                  %s1617 = scalar_select %p1616, 0, %s1615
                  %s1618 = smul.u32 %s1617, 8
                  %s1619 = smul.u32 %s1617, 8
                  %s1620 = scalar_lea.vmem %s1601, %s1618 [#allocation4]
                  %s1621 = scalar_lea.vmem %s1603, %s1619
                $region90: #{mlp_forward.1} parent=77 // loop_footer
                  %s1607 = sadd.s32 %s1605, 1
                $region91: #{mlp_forward.1} parent=77 // loop_footer_branch
                  %1604 = sbr.rel target = $region87
                $region92: #{mlp_forward.1} parent=77 // loop_exit
                  _
              $region78: #{mlp_forward.1} parent=55 // pred_fallthru
                _
              // Predicated region
              $region93: #{mlp_forward.1} parent=55 // pred_check
                _
              $region94: #{mlp_forward.1} parent=55 // pred_check_branch
                %1623 = sbr.rel target = $region96
              $region95: #{mlp_forward.1} parent=55 // pred_region
                _
              $region96: #{mlp_forward.1} parent=55 // pred_fallthru
                _
            $region56: #{mlp_forward.1} parent=51 // pred_fallthru
              _
            // Predicated region
            $region57: #{mlp_forward.1} parent=51 // pred_check
              _
            $region58: #{mlp_forward.1} parent=51 // pred_check_branch
              %1469 = sbr.rel target = $region60
            $region59: #{mlp_forward.1} parent=51 // pred_region
              %s1471 = ssub.s32 256, 1
              %s1472 = sshrl.u32 %s1458, 4
              // While loop
              $region61: #{mlp_forward.1} parent=59 // loop_pre_header
                _
              $region62: #{mlp_forward.1} parent=59 // loop_header
                %s1474 = sphi 0, %s1476
                %p1475 = scmp.ge.s32.totalorder %s1474, %s1472
                %s1479 = sphi 0, %s1516
                %s1480 = sphi %s1451, %s1519
                %s1481 = sphi %s1462, %s1520
              $region63: #{mlp_forward.1} parent=59 // loop_header_branch
                %1478 = sbr.rel (%p1475) target = $region67
              $region64: #{mlp_forward.1} parent=59 // loop_body
                %v1482 = vld [vmem:[%s1480] sm:%s1471]
                %1483 = vst [vmem:[%s1481] sm:%s1471] %v1482
                %v1484 = vld [vmem:[%s1480 + $0x8] sm:%s1471]
                %1485 = vst [vmem:[%s1481 + $0x8] sm:%s1471] %v1484
                %v1486 = vld [vmem:[%s1480 + $0x10] sm:%s1471]
                %1487 = vst [vmem:[%s1481 + $0x10] sm:%s1471] %v1486
                %v1488 = vld [vmem:[%s1480 + $0x18] sm:%s1471]
                %1489 = vst [vmem:[%s1481 + $0x18] sm:%s1471] %v1488
                %v1490 = vld [vmem:[%s1480 + $0x20] sm:%s1471]
                %1491 = vst [vmem:[%s1481 + $0x20] sm:%s1471] %v1490
                %v1492 = vld [vmem:[%s1480 + $0x28] sm:%s1471]
                %1493 = vst [vmem:[%s1481 + $0x28] sm:%s1471] %v1492
                %v1494 = vld [vmem:[%s1480 + $0x30] sm:%s1471]
                %1495 = vst [vmem:[%s1481 + $0x30] sm:%s1471] %v1494
                %v1496 = vld [vmem:[%s1480 + $0x38] sm:%s1471]
                %1497 = vst [vmem:[%s1481 + $0x38] sm:%s1471] %v1496
                %v1498 = vld [vmem:[%s1480 + $0x40] sm:%s1471]
                %1499 = vst [vmem:[%s1481 + $0x40] sm:%s1471] %v1498
                %v1500 = vld [vmem:[%s1480 + $0x48] sm:%s1471]
                %1501 = vst [vmem:[%s1481 + $0x48] sm:%s1471] %v1500
                %v1502 = vld [vmem:[%s1480 + $0x50] sm:%s1471]
                %1503 = vst [vmem:[%s1481 + $0x50] sm:%s1471] %v1502
                %v1504 = vld [vmem:[%s1480 + $0x58] sm:%s1471]
                %1505 = vst [vmem:[%s1481 + $0x58] sm:%s1471] %v1504
                %v1506 = vld [vmem:[%s1480 + $0x60] sm:%s1471]
                %1507 = vst [vmem:[%s1481 + $0x60] sm:%s1471] %v1506
                %v1508 = vld [vmem:[%s1480 + $0x68] sm:%s1471]
                %1509 = vst [vmem:[%s1481 + $0x68] sm:%s1471] %v1508
                %v1510 = vld [vmem:[%s1480 + $0x70] sm:%s1471]
                %1511 = vst [vmem:[%s1481 + $0x70] sm:%s1471] %v1510
                %v1512 = vld [vmem:[%s1480 + $0x78] sm:%s1471]
                %1513 = vst [vmem:[%s1481 + $0x78] sm:%s1471] %v1512
                %s1514 = sadd.s32 1, %s1479
                %p1515 = scmp.ge.s32.totalorder %s1514, %s1472
                %s1516 = scalar_select %p1515, 0, %s1514
                %s1517 = smul.u32 %s1516, 128
                %s1518 = smul.u32 %s1516, 128
                %s1519 = scalar_lea.vmem %s1451, %s1517 [#allocation4]
                %s1520 = scalar_lea.vmem %s1462, %s1518
              $region65: #{mlp_forward.1} parent=59 // loop_footer
                %s1476 = sadd.s32 %s1474, 1
              $region66: #{mlp_forward.1} parent=59 // loop_footer_branch
                %1473 = sbr.rel target = $region62
              $region67: #{mlp_forward.1} parent=59 // loop_exit
                _
              %s1521 = sshrl.u32 %s1458, 4
              %s1522 = sand.u32 %s1458, 15
              %s1523 = smul.u32 %s1521, 16
              %s1524 = smul.u32 8, %s1523
              %s1525 = scalar_lea.vmem %s1451, %s1524 [#allocation4]
              %s1526 = smul.u32 8, %s1523
              %s1527 = scalar_lea.vmem %s1462, %s1526
              // While loop
              $region68: #{mlp_forward.1} parent=59 // loop_pre_header
                _
              $region69: #{mlp_forward.1} parent=59 // loop_header
                %s1529 = sphi 0, %s1531
                %p1530 = scmp.ge.s32.totalorder %s1529, %s1522
                %s1534 = sphi 0, %s1541
                %s1535 = sphi %s1525, %s1544
                %s1536 = sphi %s1527, %s1545
              $region70: #{mlp_forward.1} parent=59 // loop_header_branch
                %1533 = sbr.rel (%p1530) target = $region74
              $region71: #{mlp_forward.1} parent=59 // loop_body
                %v1537 = vld [vmem:[%s1535] sm:%s1471]
                %1538 = vst [vmem:[%s1536] sm:%s1471] %v1537
                %s1539 = sadd.s32 1, %s1534
                %p1540 = scmp.ge.s32.totalorder %s1539, %s1522
                %s1541 = scalar_select %p1540, 0, %s1539
                %s1542 = smul.u32 %s1541, 8
                %s1543 = smul.u32 %s1541, 8
                %s1544 = scalar_lea.vmem %s1525, %s1542 [#allocation4]
                %s1545 = scalar_lea.vmem %s1527, %s1543
              $region72: #{mlp_forward.1} parent=59 // loop_footer
                %s1531 = sadd.s32 %s1529, 1
              $region73: #{mlp_forward.1} parent=59 // loop_footer_branch
                %1528 = sbr.rel target = $region69
              $region74: #{mlp_forward.1} parent=59 // loop_exit
                _
            $region60: #{mlp_forward.1} parent=51 // pred_fallthru
              _
          $region52: #{mlp_forward.1} parent=47 // pred_fallthru
            _
          %1624 = vnop
        $region48: #{mlp_forward.1} parent=39 // pred_fallthru
          _
      $region40: #{mlp_forward.1} parent=5 // pred_fallthru
        _
      %p1625 = scmp.le.s32.totalorder 2, %s14
      // Predicated region
      $region97: #{mlp_forward.1} parent=5 // pred_check
        %p1626 = pneg %p1625
      $region98: #{mlp_forward.1} parent=5 // pred_check_branch
        %1628 = sbr.rel (%p1626) target = $region100
      $region99: #{mlp_forward.1} parent=5 // pred_region
        %s1629 = ssub.s32 %s14, 2
        // Predicated region
        $region101: #{mlp_forward.1} parent=99 // pred_check
          %p1630 = pneg %p153
        $region102: #{mlp_forward.1} parent=99 // pred_check_branch
          %1632 = sbr.rel (%p1630) target = $region104
        $region103: #{mlp_forward.1} parent=99 // pred_region
          %s1633 = sand.u32 %s138, 1
          %s1634 = sand.u32 %s138, 1
          %s1635 = smul.addr %s1634, 128
          %s1636 = scalar_lea.vmem [#allocation4], %s1635
        $region104: #{mlp_forward.1} parent=99 // pred_fallthru
          _
      $region100: #{mlp_forward.1} parent=5 // pred_fallthru
        _
    $region6: #{mlp_forward.1} parent=1 // loop_footer
      %s18 = sadd.s32 1, %s14
    $region7: #{mlp_forward.1} parent=1 // loop_footer_branch
      %13 = sbr.rel target = $region3
    $region8: #{mlp_forward.1} parent=1 // loop_exit
      _
    %1637 = vsyncpa [#allocation3], 1
    %s1638 = scalar_lea.sflag [#allocation3], 1
    %1639 = vsyncpa %s1638, 1

</llo_original>
